<compile_context>
chip_gen: v5e
topology: v5e:2x2
jax: 0.10.0
libtpu: 0.0.40
codegen_flags: <defaults>
</compile_context>

<pallas_src>
import functools
import math

import jax
import jax.numpy as jnp
import numpy as np
from jax.experimental import pallas as pl
from jax.experimental.pallas import tpu as pltpu

NUM_CLUSTERS = 5


def _gelu(x):
    # exact (erf-based) GELU, matching torch.nn.GELU() default
    return 0.5 * x * (1.0 + jax.lax.erf(x * 0.7071067811865476))


# --------------------------------------------------------------------------
# Pallas kernel: one batch *slice* (b/num_steps elements) per grid step.
#   q_ref  : (nq, D)        flattened Q rows (batch-major, then l)
#   k_ref  : (P, nkb, D)    pooled K, pooled axis leading, rows (batch, l)
#   v_ref  : (P, nkb, D)    pooled V
#   w3/b3  : fused cluster projection weights (D, 3C) / (1, 3C)  [wq|wk|wv]
#   wb/bb  : proj_back_to_cluster_k weights (C, D) / (1, D)
# outputs:
#   center_ref : (nq, D)    proj_back(cluster_context)
#   stats_ref  : (nq, 2)    column 0 = logsumexp(probs), column 1 = mean(cq)
# --------------------------------------------------------------------------
def _clustering_kernel(q_ref, k_ref, v_ref, w3_ref, b3_ref, wb_ref, bb_ref,
                       center_ref, stats_ref, *, num_clusters):
    P = k_ref.shape[0]
    nkb = k_ref.shape[1]          # rows per pooled slice (= nq since l == l_k)
    D = k_ref.shape[2]
    nq = q_ref.shape[0]
    nk = P * nkb
    C = wb_ref.shape[0]
    inv_ncl = 1.0 / float(num_clusters)

    q2 = q_ref[...]                                   # (nq, D)
    k2 = k_ref[...].reshape(nk, D)                    # (nk, D) rows ordered (p, batch, l)
    v2 = v_ref[...].reshape(nk, D)

    # --- single fused projection matmul for cluster_q / cluster_k / cluster_v
    x = jnp.concatenate([q2, k2, v2], axis=0)         # (nq + 2*nk, D)
    y = _gelu(jnp.dot(x, w3_ref[...], preferred_element_type=jnp.float32)
              + b3_ref[...])                          # (nq + 2*nk, 3C)

    cq = y[0:nq, 0:C]                                 # (nq, C)

    # --- scores over the pooled axis P (P is tiny and static; P == 1 here)
    score_cols = []
    cvs = []
    for pi in range(P):
        ck_p = y[nq + pi * nkb: nq + (pi + 1) * nkb, C:2 * C]             # (nq, C)
        cv_p = y[nq + nk + pi * nkb: nq + nk + (pi + 1) * nkb, 2 * C:3 * C]
        score_cols.append(jnp.sum(cq * ck_p, axis=-1, keepdims=True))     # (nq, 1)
        cvs.append(cv_p)
    scores = (score_cols[0] if P == 1
              else jnp.concatenate(score_cols, axis=-1)) * inv_ncl        # (nq, P)

    # --- softmax over P (reciprocal on the EUP, no VALU divide)
    m = jnp.max(scores, axis=-1, keepdims=True)
    e = jnp.exp(scores - m)
    probs = e * pl.reciprocal(jnp.sum(e, axis=-1, keepdims=True), approx=True)

    # --- cluster context: einsum('blcp, blpd -> blcd') with c == 1
    ctx = probs[:, 0:1] * cvs[0]
    for pi in range(1, P):
        ctx = ctx + probs[:, pi:pi + 1] * cvs[pi]                         # (nq, C)

    # --- torch.logsumexp(scores, -1) on the *softmaxed* scores (as in the source)
    m2 = jnp.max(probs, axis=-1, keepdims=True)
    lse = m2 + jnp.log(jnp.sum(jnp.exp(probs - m2), axis=-1, keepdims=True))  # (nq, 1)

    # --- mu = mean of cluster_q over the projection width
    mu = jnp.sum(cq, axis=-1, keepdims=True) * (1.0 / C)                  # (nq, 1)

    # --- project back to d_model
    center = _gelu(jnp.dot(ctx, wb_ref[...], preferred_element_type=jnp.float32)
                   + bb_ref[...])                                         # (nq, D)

    center_ref[...] = center
    stats_ref[...] = jnp.concatenate([lse, mu], axis=-1)                  # (nq, 2)


# --------------------------------------------------------------------------
# Glue: padding / unfold / reshape / AvgPool2d, identical to the PyTorch code.
# Kernel-facing arrays are produced directly in the layouts the kernel wants
# (no post-hoc transpose materialization).
# --------------------------------------------------------------------------
def _preprocess(Q, K, V):
    b, h, l, d_k = Q.shape
    l_k = K.shape[2]
    d_model = h * d_k
    unfolding = b // 4

    padding = jnp.zeros((unfolding, h, l_k, d_k), K.dtype)
    K_padded = jnp.concatenate([padding, K[1:]], axis=0)
    V_padded = jnp.concatenate([padding, V[1:]], axis=0)
    # torch .unfold(0, unfolding, 1): appends a new trailing axis of size `unfolding`
    K_unf = jnp.stack([K_padded[u:u + b] for u in range(unfolding)], axis=-1)
    V_unf = jnp.stack([V_padded[u:u + b] for u in range(unfolding)], axis=-1)
    K_unf = K_unf.reshape(b, l_k, unfolding, d_model)     # "scrambled" torch reshape
    V_unf = V_unf.reshape(b, l, unfolding, d_model)

    Q2 = Q.reshape(b * l, d_model)                        # (b*l, D)

    # AvgPool2d(kernel=(3,1), stride=(3,1), padding=(1,0), count_include_pad=True)
    # over the unfolding axis, emitted directly in pooled-axis-leading layout
    # (P, b*l, d_model) so no separate HBM transpose is needed.
    h_out = (unfolding + 2 - 3) // 3 + 1
    Kpad = jnp.pad(K_unf, ((0, 0), (0, 0), (1, 1), (0, 0)))
    Vpad = jnp.pad(V_unf, ((0, 0), (0, 0), (1, 1), (0, 0)))
    Kp = jnp.stack([(jnp.sum(Kpad[:, :, 3 * o:3 * o + 3, :], axis=2) * (1.0 / 3.0)
                     ).reshape(b * l_k, d_model) for o in range(h_out)], axis=0)
    Vp = jnp.stack([(jnp.sum(Vpad[:, :, 3 * o:3 * o + 3, :], axis=2) * (1.0 / 3.0)
                     ).reshape(b * l, d_model) for o in range(h_out)], axis=0)
    return Q2, Kp, Vp                                     # (b*l,D), (P,b*l,D), (P,b*l,D)


def clustering_forward(Q, K, V, params, num_clusters=NUM_CLUSTERS):
    b, h, l, d_k = Q.shape
    l_k = K.shape[2]
    d_model = h * d_k
    # The final reshape in the PyTorch module (b, l, 1, d_model) -> (b, h, l_k, d_k)
    # silently assumes l == l_k; make that explicit.
    assert l == l_k, "Clustering forward assumes l == l_k"
    assert b % 4 == 0, "batch must be divisible by 4 (unfolding = b/4)"

    wq, bq, wk, bk, wv, bv, wback, bback = params
    # Fuse the three cluster projections into a single (D, 3C) weight -> one matmul.
    w3 = jnp.concatenate([wq, wk, wv], axis=1)            # (D, 3C)
    b3 = jnp.concatenate([bq, bk, bv], axis=1)            # (1, 3C)

    Q2, Kp, Vp = _preprocess(Q, K, V)
    P = Kp.shape[0]

    # 2 grid steps so a v7x chip can put half the batch on each TensorCore;
    # on v5e/v6e the second step only adds ~0.35 us of pipeline overhead.
    n_steps = 2 if (b % 2 == 0 and b >= 2) else 1
    bsz = b // n_steps
    nq = bsz * l
    nkb = bsz * l_k

    kernel = functools.partial(_clustering_kernel, num_clusters=num_clusters)

    center, stats = pl.pallas_call(
        kernel,
        out_shape=(
            jax.ShapeDtypeStruct((b * l, d_model), jnp.float32),
            jax.ShapeDtypeStruct((b * l, 2), jnp.float32),
        ),
        grid=(n_steps,),
        in_specs=[
            pl.BlockSpec((nq, d_model), lambda i: (i, 0)),
            pl.BlockSpec((P, nkb, d_model), lambda i: (0, i, 0)),
            pl.BlockSpec((P, nkb, d_model), lambda i: (0, i, 0)),
            pl.BlockSpec(w3.shape, lambda i: (0, 0)),
            pl.BlockSpec(b3.shape, lambda i: (0, 0)),
            pl.BlockSpec(wback.shape, lambda i: (0, 0)),
            pl.BlockSpec(bback.shape, lambda i: (0, 0)),
        ],
        out_specs=[
            pl.BlockSpec((nq, d_model), lambda i: (i, 0)),
            pl.BlockSpec((nq, 2), lambda i: (i, 0)),
        ],
        compiler_params=pltpu.CompilerParams(
            dimension_semantics=("parallel",)),
    )(Q2, Kp, Vp, w3, b3, wback, bback)

    # (b*l, d_model) row-major == (b, l, 1, d_model) row-major -> (b, h, l_k, d_k)
    cluster_center = center.reshape(b, h, l_k, d_k)

    # loss = -mean(logsumexp(probs, -1)) + 0.001 * CrossEntropyLoss(mu, mu)
    # (CrossEntropyLoss with float targets: classes along dim 1 of (b, l)).
    lse = stats[:, 0]
    mu2 = stats[:, 1].reshape(b, l)
    logsm = jax.nn.log_softmax(mu2, axis=1)
    ce = -jnp.mean(jnp.sum(mu2 * logsm, axis=1))
    loss = -jnp.mean(lse) + 0.001 * ce
    return cluster_center, loss


# --------------------------------------------------------------------------
# Pure-JAX reference (same math, torch-style layouts, no Pallas) for sanity check.
# --------------------------------------------------------------------------
def _avgpool_h3(x):
    # nn.AvgPool2d((3,1), stride (3,1), padding (1,0), count_include_pad=True)
    H = x.shape[2]
    xp = jnp.pad(x, ((0, 0), (0, 0), (1, 1), (0, 0)))
    h_out = (H + 2 - 3) // 3 + 1
    wins = [jnp.sum(xp[:, :, 3 * o:3 * o + 3, :], axis=2) / 3.0 for o in range(h_out)]
    return jnp.stack(wins, axis=2)


def reference_forward(Q, K, V, params, num_clusters=NUM_CLUSTERS):
    b, h, l, d_k = Q.shape
    l_k = K.shape[2]
    d_model = h * d_k
    wq, bq, wk, bk, wv, bv, wback, bback = params

    unfolding = b // 4
    padding = jnp.zeros((unfolding, h, l_k, d_k), K.dtype)
    K_padded = jnp.concatenate([padding, K[1:]], axis=0)
    V_padded = jnp.concatenate([padding, V[1:]], axis=0)
    K_unf = jnp.stack([K_padded[u:u + b] for u in range(unfolding)], axis=-1)
    V_unf = jnp.stack([V_padded[u:u + b] for u in range(unfolding)], axis=-1)
    K_unf = K_unf.reshape(b, l_k, -1, d_model)
    Q_unf = Q.reshape(b, l, -1, d_model)
    V_unf = V_unf.reshape(b, l, -1, d_model)
    Kp = _avgpool_h3(K_unf)
    Vp = _avgpool_h3(V_unf)

    cq = _gelu(Q_unf @ wq + bq)                    # (b, l, 1, C)
    ck = _gelu(Kp @ wk + bk)                       # (b, l, P, C)
    cv = _gelu(Vp @ wv + bv)
    scores = jnp.einsum('blcd,blpd->blcp', cq, ck) / num_clusters
    probs = jax.nn.softmax(scores, axis=-1)
    ctx = jnp.einsum('blcp,blpd->blcd', probs, cv)
    mu = jnp.mean(cq, axis=-1)                     # (b, l, 1)
    lse = jax.scipy.special.logsumexp(probs, axis=-1)
    center = _gelu(ctx @ wback + bback).reshape(b, h, l_k, d_k)

    mu2 = mu[:, :, 0]
    logsm = jax.nn.log_softmax(mu2, axis=1)
    ce = -jnp.mean(jnp.sum(mu2 * logsm, axis=1))
    loss = -jnp.mean(lse) + 0.001 * ce
    return center, loss


if __name__ == "__main__":
    b, h, l, d_k = 4, 4, 16, 8
    d_model = h * d_k

    key = jax.random.PRNGKey(0)
    kq, kk, kv, *pk = jax.random.split(key, 11)
    Q = jax.random.normal(kq, (b, h, l, d_k), jnp.float32)
    K = jax.random.normal(kk, (b, h, l, d_k), jnp.float32)
    V = jax.random.normal(kv, (b, h, l, d_k), jnp.float32)

    def lin_init(kw, kb, fan_in, fan_out):
        bound = 1.0 / math.sqrt(fan_in)
        w = jax.random.uniform(kw, (fan_in, fan_out), jnp.float32, -bound, bound)
        bias = jax.random.uniform(kb, (1, fan_out), jnp.float32, -bound, bound)
        return w, bias

    wq_, bq_ = lin_init(pk[0], pk[1], d_model, NUM_CLUSTERS)
    wk_, bk_ = lin_init(pk[2], pk[3], d_model, NUM_CLUSTERS)
    wv_, bv_ = lin_init(pk[4], pk[5], d_model, NUM_CLUSTERS)
    wb_, bb_ = lin_init(pk[6], pk[7], NUM_CLUSTERS, d_model)
    params = (wq_, bq_, wk_, bk_, wv_, bv_, wb_, bb_)

    center, loss = clustering_forward(Q, K, V, params)
    center, loss = jax.block_until_ready((center, loss))

    ref_center, ref_loss = reference_forward(Q, K, V, params)
    assert center.shape == (b, h, l, d_k)
    np.testing.assert_allclose(np.asarray(center), np.asarray(ref_center),
                               rtol=1e-2, atol=1e-3)
    np.testing.assert_allclose(float(loss), float(ref_loss), rtol=1e-2, atol=1e-3)

    print("KERNEL_OK")
</pallas_src>

<mosaic_0001>
module attributes {stable_mosaic.version = 11 : i64} {
  func.func @_clustering_kernel(%arg0: i32, %arg1: memref<32x32xf32, #tpu.memory_space<vmem>>, %arg2: memref<1x32x32xf32, #tpu.memory_space<vmem>>, %arg3: memref<1x32x32xf32, #tpu.memory_space<vmem>>, %arg4: memref<32x15xf32, #tpu.memory_space<vmem>>, %arg5: memref<1x15xf32, #tpu.memory_space<vmem>>, %arg6: memref<5x32xf32, #tpu.memory_space<vmem>>, %arg7: memref<1x32xf32, #tpu.memory_space<vmem>>, %arg8: memref<32x32xf32, #tpu.memory_space<vmem>>, %arg9: memref<32x2xf32, #tpu.memory_space<vmem>>) attributes {dimension_semantics = [#tpu.dimension_semantics<parallel>], iteration_bounds = array<i64: 2>, scalar_prefetch = 0 : i64, scratch_operands = 0 : i64, tpu.core_type = #tpu.core_type<tc>, window_params = [{transform_indices = @transform_0, window_bounds = array<i64: 32, 32>}, {transform_indices = @transform_1, window_bounds = array<i64: 1, 32, 32>}, {transform_indices = @transform_2, window_bounds = array<i64: 1, 32, 32>}, {pipeline_mode = #tpu.pipeline_mode<synchronous>, transform_indices = @transform_3, window_bounds = array<i64: 32, 15>}, {pipeline_mode = #tpu.pipeline_mode<synchronous>, transform_indices = @transform_4, window_bounds = array<i64: 1, 15>}, {pipeline_mode = #tpu.pipeline_mode<synchronous>, transform_indices = @transform_5, window_bounds = array<i64: 5, 32>}, {pipeline_mode = #tpu.pipeline_mode<synchronous>, transform_indices = @transform_6, window_bounds = array<i64: 1, 32>}, {transform_indices = @transform_7, window_bounds = array<i64: 32, 32>}, {transform_indices = @transform_8, window_bounds = array<i64: 32, 2>}]} {
    %c0 = arith.constant 0 : index
    %c0_0 = arith.constant 0 : index
    %0 = vector.load %arg1[%c0, %c0_0] : memref<32x32xf32, #tpu.memory_space<vmem>>, vector<32x32xf32>
    %c0_1 = arith.constant 0 : index
    %c0_2 = arith.constant 0 : index
    %c0_3 = arith.constant 0 : index
    %1 = vector.load %arg2[%c0_1, %c0_2, %c0_3] : memref<1x32x32xf32, #tpu.memory_space<vmem>>, vector<1x32x32xf32>
    %2 = vector.shape_cast %1 : vector<1x32x32xf32> to vector<32x32xf32>
    %c0_4 = arith.constant 0 : index
    %c0_5 = arith.constant 0 : index
    %c0_6 = arith.constant 0 : index
    %3 = vector.load %arg3[%c0_4, %c0_5, %c0_6] : memref<1x32x32xf32, #tpu.memory_space<vmem>>, vector<1x32x32xf32>
    %4 = vector.shape_cast %3 : vector<1x32x32xf32> to vector<32x32xf32>
    %5 = tpu.concatenate %0, %2, %4 in 0 : vector<32x32xf32>, vector<32x32xf32>, vector<32x32xf32> -> vector<96x32xf32>
    %c0_7 = arith.constant 0 : index
    %c0_8 = arith.constant 0 : index
    %6 = vector.load %arg4[%c0_7, %c0_8] : memref<32x15xf32, #tpu.memory_space<vmem>>, vector<32x15xf32>
    %cst = arith.constant dense<0.000000e+00> : vector<96x15xf32>
    %7 = tpu.matmul %5, %6, %cst {dimension_numbers = #tpu.dot_dimension_numbers<[1], [0], [0], [1], [0, 0, 1, 1], [], []>} : vector<96x32xf32>, vector<32x15xf32>, vector<96x15xf32> -> vector<96x15xf32>
    %c0_9 = arith.constant 0 : index
    %c0_10 = arith.constant 0 : index
    %8 = vector.load %arg5[%c0_9, %c0_10] : memref<1x15xf32, #tpu.memory_space<vmem>>, vector<1x15xf32>
    %9 = vector.broadcast %8 : vector<1x15xf32> to vector<96x15xf32>
    %10 = arith.addf %7, %9 : vector<96x15xf32>
    %cst_11 = arith.constant 5.000000e-01 : f32
    %11 = vector.broadcast %cst_11 : f32 to vector<96x15xf32>
    %12 = arith.mulf %11, %10 : vector<96x15xf32>
    %cst_12 = arith.constant 0.707106769 : f32
    %13 = vector.broadcast %cst_12 : f32 to vector<96x15xf32>
    %14 = arith.mulf %10, %13 : vector<96x15xf32>
    %15 = math.erf %14 : vector<96x15xf32>
    %cst_13 = arith.constant 1.000000e+00 : f32
    %16 = vector.broadcast %cst_13 : f32 to vector<96x15xf32>
    %17 = arith.addf %16, %15 : vector<96x15xf32>
    %18 = arith.mulf %12, %17 : vector<96x15xf32>
    %19 = vector.extract_strided_slice %18 {offsets = [0, 0], sizes = [32, 5], strides = [1, 1]} : vector<96x15xf32> to vector<32x5xf32>
    %20 = vector.extract_strided_slice %18 {offsets = [32, 5], sizes = [32, 5], strides = [1, 1]} : vector<96x15xf32> to vector<32x5xf32>
    %21 = vector.extract_strided_slice %18 {offsets = [64, 10], sizes = [32, 5], strides = [1, 1]} : vector<96x15xf32> to vector<32x5xf32>
    %22 = arith.mulf %19, %20 : vector<32x5xf32>
    %cst_14 = arith.constant dense<0.000000e+00> : vector<32xf32>
    %23 = vector.multi_reduction <add>, %22, %cst_14 [1] : vector<32x5xf32> to vector<32xf32>
    %24 = vector.shape_cast %23 : vector<32xf32> to vector<32x1xf32>
    %cst_15 = arith.constant 2.000000e-01 : f32
    %25 = vector.broadcast %cst_15 : f32 to vector<32x1xf32>
    %26 = arith.mulf %24, %25 : vector<32x1xf32>
    %cst_16 = arith.constant dense<0xFF800000> : vector<32xf32>
    %27 = vector.multi_reduction <maximumf>, %26, %cst_16 [1] : vector<32x1xf32> to vector<32xf32>
    %28 = vector.shape_cast %27 : vector<32xf32> to vector<32x1xf32>
    %29 = arith.subf %26, %28 : vector<32x1xf32>
    %30 = math.exp %29 : vector<32x1xf32>
    %cst_17 = arith.constant dense<0.000000e+00> : vector<32xf32>
    %31 = vector.multi_reduction <add>, %30, %cst_17 [1] : vector<32x1xf32> to vector<32xf32>
    %32 = vector.shape_cast %31 : vector<32xf32> to vector<32x1xf32>
    %33 = tpu.reciprocal %32 {approx = true} : vector<32x1xf32> -> vector<32x1xf32>
    %34 = arith.mulf %30, %33 : vector<32x1xf32>
    %35 = vector.broadcast %34 : vector<32x1xf32> to vector<32x5xf32>
    %36 = arith.mulf %35, %21 : vector<32x5xf32>
    %cst_18 = arith.constant dense<0xFF800000> : vector<32xf32>
    %37 = vector.multi_reduction <maximumf>, %34, %cst_18 [1] : vector<32x1xf32> to vector<32xf32>
    %38 = vector.shape_cast %37 : vector<32xf32> to vector<32x1xf32>
    %39 = arith.subf %34, %38 : vector<32x1xf32>
    %40 = math.exp %39 : vector<32x1xf32>
    %cst_19 = arith.constant dense<0.000000e+00> : vector<32xf32>
    %41 = vector.multi_reduction <add>, %40, %cst_19 [1] : vector<32x1xf32> to vector<32xf32>
    %42 = vector.shape_cast %41 : vector<32xf32> to vector<32x1xf32>
    %43 = math.log %42 : vector<32x1xf32>
    %44 = arith.addf %38, %43 : vector<32x1xf32>
    %cst_20 = arith.constant dense<0.000000e+00> : vector<32xf32>
    %45 = vector.multi_reduction <add>, %19, %cst_20 [1] : vector<32x5xf32> to vector<32xf32>
    %46 = vector.shape_cast %45 : vector<32xf32> to vector<32x1xf32>
    %cst_21 = arith.constant 2.000000e-01 : f32
    %47 = vector.broadcast %cst_21 : f32 to vector<32x1xf32>
    %48 = arith.mulf %46, %47 : vector<32x1xf32>
    %c0_22 = arith.constant 0 : index
    %c0_23 = arith.constant 0 : index
    %49 = vector.load %arg6[%c0_22, %c0_23] : memref<5x32xf32, #tpu.memory_space<vmem>>, vector<5x32xf32>
    %cst_24 = arith.constant dense<0.000000e+00> : vector<32x32xf32>
    %50 = tpu.matmul %36, %49, %cst_24 {dimension_numbers = #tpu.dot_dimension_numbers<[1], [0], [0], [1], [0, 0, 1, 1], [], []>} : vector<32x5xf32>, vector<5x32xf32>, vector<32x32xf32> -> vector<32x32xf32>
    %c0_25 = arith.constant 0 : index
    %c0_26 = arith.constant 0 : index
    %51 = vector.load %arg7[%c0_25, %c0_26] : memref<1x32xf32, #tpu.memory_space<vmem>>, vector<1x32xf32>
    %52 = vector.broadcast %51 : vector<1x32xf32> to vector<32x32xf32>
    %53 = arith.addf %50, %52 : vector<32x32xf32>
    %cst_27 = arith.constant 5.000000e-01 : f32
    %54 = vector.broadcast %cst_27 : f32 to vector<32x32xf32>
    %55 = arith.mulf %54, %53 : vector<32x32xf32>
    %cst_28 = arith.constant 0.707106769 : f32
    %56 = vector.broadcast %cst_28 : f32 to vector<32x32xf32>
    %57 = arith.mulf %53, %56 : vector<32x32xf32>
    %58 = math.erf %57 : vector<32x32xf32>
    %cst_29 = arith.constant 1.000000e+00 : f32
    %59 = vector.broadcast %cst_29 : f32 to vector<32x32xf32>
    %60 = arith.addf %59, %58 : vector<32x32xf32>
    %61 = arith.mulf %55, %60 : vector<32x32xf32>
    %c0_30 = arith.constant 0 : index
    %c0_31 = arith.constant 0 : index
    %62 = vector.load %arg8[%c0_30, %c0_31] : memref<32x32xf32, #tpu.memory_space<vmem>>, vector<32x32xf32>
    tpu.vector_store %arg8[%c0_30, %c0_31], %61 {strides = array<i32>} : memref<32x32xf32, #tpu.memory_space<vmem>>, vector<32x32xf32>,
    %63 = tpu.concatenate %44, %48 in 1 : vector<32x1xf32>, vector<32x1xf32> -> vector<32x2xf32>
    %c0_32 = arith.constant 0 : index
    %c0_33 = arith.constant 0 : index
    %64 = vector.load %arg9[%c0_32, %c0_33] : memref<32x2xf32, #tpu.memory_space<vmem>>, vector<32x2xf32>
    tpu.vector_store %arg9[%c0_32, %c0_33], %63 {strides = array<i32>} : memref<32x2xf32, #tpu.memory_space<vmem>>, vector<32x2xf32>,
    return
  }
  func.func @transform_0(%arg0: i32) -> (i32, i32) {
    %c0_i32 = arith.constant 0 : i32
    %c0_i32_0 = arith.constant 0 : i32
    return %arg0, %c0_i32 : i32, i32
  }
  func.func @transform_1(%arg0: i32) -> (i32, i32, i32) {
    %c0_i32 = arith.constant 0 : i32
    %c0_i32_0 = arith.constant 0 : i32
    %c0_i32_1 = arith.constant 0 : i32
    return %c0_i32, %arg0, %c0_i32_0 : i32, i32, i32
  }
  func.func @transform_2(%arg0: i32) -> (i32, i32, i32) {
    %c0_i32 = arith.constant 0 : i32
    %c0_i32_0 = arith.constant 0 : i32
    %c0_i32_1 = arith.constant 0 : i32
    return %c0_i32, %arg0, %c0_i32_0 : i32, i32, i32
  }
  func.func @transform_3(%arg0: i32) -> (i32, i32) {
    %c0_i32 = arith.constant 0 : i32
    %c0_i32_0 = arith.constant 0 : i32
    %c0_i32_1 = arith.constant 0 : i32
    return %c0_i32, %c0_i32_0 : i32, i32
  }
  func.func @transform_4(%arg0: i32) -> (i32, i32) {
    %c0_i32 = arith.constant 0 : i32
    %c0_i32_0 = arith.constant 0 : i32
    %c0_i32_1 = arith.constant 0 : i32
    return %c0_i32, %c0_i32_0 : i32, i32
  }
  func.func @transform_5(%arg0: i32) -> (i32, i32) {
    %c0_i32 = arith.constant 0 : i32
    %c0_i32_0 = arith.constant 0 : i32
    %c0_i32_1 = arith.constant 0 : i32
    return %c0_i32, %c0_i32_0 : i32, i32
  }
  func.func @transform_6(%arg0: i32) -> (i32, i32) {
    %c0_i32 = arith.constant 0 : i32
    %c0_i32_0 = arith.constant 0 : i32
    %c0_i32_1 = arith.constant 0 : i32
    return %c0_i32, %c0_i32_0 : i32, i32
  }
  func.func @transform_7(%arg0: i32) -> (i32, i32) {
    %c0_i32 = arith.constant 0 : i32
    %c0_i32_0 = arith.constant 0 : i32
    return %arg0, %c0_i32 : i32, i32
  }
  func.func @transform_8(%arg0: i32) -> (i32, i32) {
    %c0_i32 = arith.constant 0 : i32
    %c0_i32_0 = arith.constant 0 : i32
    return %arg0, %c0_i32 : i32, i32
  }
}

</mosaic_0001>

<llo_original>
// kernel: tpu_custom_call.1
$region0: #{tpu_custom_call.1}
  #allocation0 [shape = 'u32[]', space=smem, size = 0x4, offset = 0x4, fixed_abs, tag = 'smem constant byte address 0x4 - core index']
  #allocation1 [shape = 'u32[72,128]{1,0:T(1,128)}', space=vmem, size = 0x9000, scoped, tag = 'internal scratch']
  %s0 = inlined_call_operand.vmem [shape: f32[64,32], index: 0, kind: input, shape index: {}]
  %s1 = inlined_call_operand.vmem [shape: f32[1,64,32], index: 1, kind: input, shape index: {}]
  %s2 = inlined_call_operand.vmem [shape: f32[1,64,32], index: 2, kind: input, shape index: {}]
  %s3 = inlined_call_operand.vmem [shape: f32[32,15], index: 3, kind: input, shape index: {}]
  %s4 = inlined_call_operand.vmem [shape: f32[1,15], index: 4, kind: input, shape index: {}]
  %s5 = inlined_call_operand.vmem [shape: f32[5,32], index: 5, kind: input, shape index: {}]
  %s6 = inlined_call_operand.vmem [shape: f32[1,32], index: 6, kind: input, shape index: {}]
  %s7 = inlined_call_operand.vmem [shape: f32[64,32], index: 7, kind: output, shape index: {0}]
  %s8 = inlined_call_operand.vmem [shape: f32[64,2], index: 8, kind: output, shape index: {1}]
  %9 = xla_tuple %s7, %s8
  %s10 = sld [smem:[#allocation0]]
  $region69: #{tpu_custom_call.1} parent=0
    _
  %s12 = ssub.s32 1, %s10
  %s13 = scalar_select 0, %s12, %s10
  loop: start=0, step=1, limit=4
  $region2: #{tpu_custom_call.1} parent=0 // loop_pre_header
    _
  $region3: #{tpu_custom_call.1} parent=0 // loop_header
    %s15 = sphi 0, %s19
    %p16 = scmp.ge.s32.totalorder %s15, 4
    %s25 = sphi 0, %s27
    %s28 = sphi 0, %s25
    %s29 = sphi 0, %s28
    %s45 = sphi 0, %s29
    %s51 = sphi 0, %s53
    %s54 = sphi 0, %s51
    %s55 = sphi 0, %s54
    %s71 = sphi 0, %s55
    %s77 = sphi 0, %s79
    %s80 = sphi 0, %s77
    %s81 = sphi 0, %s80
    %s97 = sphi 0, %s81
    %s101 = sphi 0, %s101
    %s103 = sphi 0, %s101
    %s104 = sphi 0, %s103
    %s118 = sphi 0, %s104
    %s122 = sphi 0, %s122
    %s124 = sphi 0, %s122
    %s125 = sphi 0, %s124
    %s139 = sphi 0, %s125
    %s143 = sphi 0, %s143
    %s145 = sphi 0, %s143
    %s146 = sphi 0, %s145
    %s160 = sphi 0, %s146
    %s164 = sphi 0, %s164
    %s166 = sphi 0, %s164
    %s167 = sphi 0, %s166
    %s181 = sphi 0, %s167
    %s187 = sphi 0, %s189
    %s190 = sphi 0, %s187
    %s191 = sphi 0, %s190
    %s207 = sphi 0, %s191
    %s213 = sphi 0, %s215
    %s216 = sphi 0, %s213
    %s217 = sphi 0, %s216
    %s233 = sphi 0, %s217
  $region4: #{tpu_custom_call.1} parent=0 // loop_header_branch
    %18 = sbr.rel (%p16) target = $region8
  $region5: #{tpu_custom_call.1} parent=0 // loop_body
    %s20 = ssub.s32 %s15, 1
    %s21 = ssub.s32 %s15, 2
    %s22 = sadd.s32 %s15, 1
    %s23 = ssub.s32 %s15, %s22
    %p24 = scmp.eq.s32.totalorder %s23, 0
    %s26 = sadd.s32 %s25, 1
    %s27 = scalar_select %p24, %s25, %s26
    %p30 = pneg %p24
    %p31 = scmp.eq.s32.totalorder %s15, 1
    %p32 = por %p30, %p31
    %p33 = scmp.ne.s32.totalorder %s25, %s28
    %p34 = scmp.eq.s32.totalorder %s15, 0
    %p35 = por %p33, %p34
    %p36 = scmp.ne.s32.totalorder %s25, %s28
    %p37 = scmp.eq.s32.totalorder %s20, 1
    %p38 = por %p36, %p37
    %p39 = scmp.ne.s32.totalorder %s28, %s29
    %p40 = scmp.eq.s32.totalorder %s20, 0
    %p41 = por %p39, %p40
    %p42 = scmp.ne.s32.totalorder %s28, %s29
    %p43 = scmp.eq.s32.totalorder %s21, 1
    %p44 = por %p42, %p43
    %p46 = scmp.ne.s32.totalorder %s29, %s45
    %p47 = scmp.eq.s32.totalorder %s21, 0
    %p48 = por %p46, %p47
    %s49 = ssub.s32 %s15, %s22
    %p50 = scmp.eq.s32.totalorder %s49, 0
    %s52 = sadd.s32 %s51, 1
    %s53 = scalar_select %p50, %s51, %s52
    %p56 = pneg %p50
    %p57 = scmp.eq.s32.totalorder %s15, 1
    %p58 = por %p56, %p57
    %p59 = scmp.ne.s32.totalorder %s51, %s54
    %p60 = scmp.eq.s32.totalorder %s15, 0
    %p61 = por %p59, %p60
    %p62 = scmp.ne.s32.totalorder %s51, %s54
    %p63 = scmp.eq.s32.totalorder %s20, 1
    %p64 = por %p62, %p63
    %p65 = scmp.ne.s32.totalorder %s54, %s55
    %p66 = scmp.eq.s32.totalorder %s20, 0
    %p67 = por %p65, %p66
    %p68 = scmp.ne.s32.totalorder %s54, %s55
    %p69 = scmp.eq.s32.totalorder %s21, 1
    %p70 = por %p68, %p69
    %p72 = scmp.ne.s32.totalorder %s55, %s71
    %p73 = scmp.eq.s32.totalorder %s21, 0
    %p74 = por %p72, %p73
    %s75 = ssub.s32 %s15, %s22
    %p76 = scmp.eq.s32.totalorder %s75, 0
    %s78 = sadd.s32 %s77, 1
    %s79 = scalar_select %p76, %s77, %s78
    %p82 = pneg %p76
    %p83 = scmp.eq.s32.totalorder %s15, 1
    %p84 = por %p82, %p83
    %p85 = scmp.ne.s32.totalorder %s77, %s80
    %p86 = scmp.eq.s32.totalorder %s15, 0
    %p87 = por %p85, %p86
    %p88 = scmp.ne.s32.totalorder %s77, %s80
    %p89 = scmp.eq.s32.totalorder %s20, 1
    %p90 = por %p88, %p89
    %p91 = scmp.ne.s32.totalorder %s80, %s81
    %p92 = scmp.eq.s32.totalorder %s20, 0
    %p93 = por %p91, %p92
    %p94 = scmp.ne.s32.totalorder %s80, %s81
    %p95 = scmp.eq.s32.totalorder %s21, 1
    %p96 = por %p94, %p95
    %p98 = scmp.ne.s32.totalorder %s81, %s97
    %p99 = scmp.eq.s32.totalorder %s21, 0
    %p100 = por %p98, %p99
    %s102 = sadd.s32 %s101, 1
    %p105 = scmp.eq.s32.totalorder %s15, 1
    %p106 = scmp.ne.s32.totalorder %s101, %s103
    %p107 = scmp.eq.s32.totalorder %s15, 0
    %p108 = por %p106, %p107
    %p109 = scmp.ne.s32.totalorder %s101, %s103
    %p110 = scmp.eq.s32.totalorder %s20, 1
    %p111 = por %p109, %p110
    %p112 = scmp.ne.s32.totalorder %s103, %s104
    %p113 = scmp.eq.s32.totalorder %s20, 0
    %p114 = por %p112, %p113
    %p115 = scmp.ne.s32.totalorder %s103, %s104
    %p116 = scmp.eq.s32.totalorder %s21, 1
    %p117 = por %p115, %p116
    %p119 = scmp.ne.s32.totalorder %s104, %s118
    %p120 = scmp.eq.s32.totalorder %s21, 0
    %p121 = por %p119, %p120
    %s123 = sadd.s32 %s122, 1
    %p126 = scmp.eq.s32.totalorder %s15, 1
    %p127 = scmp.ne.s32.totalorder %s122, %s124
    %p128 = scmp.eq.s32.totalorder %s15, 0
    %p129 = por %p127, %p128
    %p130 = scmp.ne.s32.totalorder %s122, %s124
    %p131 = scmp.eq.s32.totalorder %s20, 1
    %p132 = por %p130, %p131
    %p133 = scmp.ne.s32.totalorder %s124, %s125
    %p134 = scmp.eq.s32.totalorder %s20, 0
    %p135 = por %p133, %p134
    %p136 = scmp.ne.s32.totalorder %s124, %s125
    %p137 = scmp.eq.s32.totalorder %s21, 1
    %p138 = por %p136, %p137
    %p140 = scmp.ne.s32.totalorder %s125, %s139
    %p141 = scmp.eq.s32.totalorder %s21, 0
    %p142 = por %p140, %p141
    %s144 = sadd.s32 %s143, 1
    %p147 = scmp.eq.s32.totalorder %s15, 1
    %p148 = scmp.ne.s32.totalorder %s143, %s145
    %p149 = scmp.eq.s32.totalorder %s15, 0
    %p150 = por %p148, %p149
    %p151 = scmp.ne.s32.totalorder %s143, %s145
    %p152 = scmp.eq.s32.totalorder %s20, 1
    %p153 = por %p151, %p152
    %p154 = scmp.ne.s32.totalorder %s145, %s146
    %p155 = scmp.eq.s32.totalorder %s20, 0
    %p156 = por %p154, %p155
    %p157 = scmp.ne.s32.totalorder %s145, %s146
    %p158 = scmp.eq.s32.totalorder %s21, 1
    %p159 = por %p157, %p158
    %p161 = scmp.ne.s32.totalorder %s146, %s160
    %p162 = scmp.eq.s32.totalorder %s21, 0
    %p163 = por %p161, %p162
    %s165 = sadd.s32 %s164, 1
    %p168 = scmp.eq.s32.totalorder %s15, 1
    %p169 = scmp.ne.s32.totalorder %s164, %s166
    %p170 = scmp.eq.s32.totalorder %s15, 0
    %p171 = por %p169, %p170
    %p172 = scmp.ne.s32.totalorder %s164, %s166
    %p173 = scmp.eq.s32.totalorder %s20, 1
    %p174 = por %p172, %p173
    %p175 = scmp.ne.s32.totalorder %s166, %s167
    %p176 = scmp.eq.s32.totalorder %s20, 0
    %p177 = por %p175, %p176
    %p178 = scmp.ne.s32.totalorder %s166, %s167
    %p179 = scmp.eq.s32.totalorder %s21, 1
    %p180 = por %p178, %p179
    %p182 = scmp.ne.s32.totalorder %s167, %s181
    %p183 = scmp.eq.s32.totalorder %s21, 0
    %p184 = por %p182, %p183
    %s185 = ssub.s32 %s15, %s22
    %p186 = scmp.eq.s32.totalorder %s185, 0
    %s188 = sadd.s32 %s187, 1
    %s189 = scalar_select %p186, %s187, %s188
    %p192 = pneg %p186
    %p193 = scmp.eq.s32.totalorder %s15, 1
    %p194 = por %p192, %p193
    %p195 = scmp.ne.s32.totalorder %s187, %s190
    %p196 = scmp.eq.s32.totalorder %s15, 0
    %p197 = por %p195, %p196
    %p198 = scmp.ne.s32.totalorder %s187, %s190
    %p199 = scmp.eq.s32.totalorder %s20, 1
    %p200 = por %p198, %p199
    %p201 = scmp.ne.s32.totalorder %s190, %s191
    %p202 = scmp.eq.s32.totalorder %s20, 0
    %p203 = por %p201, %p202
    %p204 = scmp.ne.s32.totalorder %s190, %s191
    %p205 = scmp.eq.s32.totalorder %s21, 1
    %p206 = por %p204, %p205
    %p208 = scmp.ne.s32.totalorder %s191, %s207
    %p209 = scmp.eq.s32.totalorder %s21, 0
    %p210 = por %p208, %p209
    %s211 = ssub.s32 %s15, %s22
    %p212 = scmp.eq.s32.totalorder %s211, 0
    %s214 = sadd.s32 %s213, 1
    %s215 = scalar_select %p212, %s213, %s214
    %p218 = pneg %p212
    %p219 = scmp.eq.s32.totalorder %s15, 1
    %p220 = por %p218, %p219
    %p221 = scmp.ne.s32.totalorder %s213, %s216
    %p222 = scmp.eq.s32.totalorder %s15, 0
    %p223 = por %p221, %p222
    %p224 = scmp.ne.s32.totalorder %s213, %s216
    %p225 = scmp.eq.s32.totalorder %s20, 1
    %p226 = por %p224, %p225
    %p227 = scmp.ne.s32.totalorder %s216, %s217
    %p228 = scmp.eq.s32.totalorder %s20, 0
    %p229 = por %p227, %p228
    %p230 = scmp.ne.s32.totalorder %s216, %s217
    %p231 = scmp.eq.s32.totalorder %s21, 1
    %p232 = por %p230, %p231
    %p234 = scmp.ne.s32.totalorder %s217, %s233
    %p235 = scmp.eq.s32.totalorder %s21, 0
    %p236 = por %p234, %p235
    %p237 = scmp.le.s32.totalorder 1, %s15
    %p238 = scmp.lt.s32.totalorder %s15, 3
    %p239 = pnand %p237, %p238
    %p240 = pneg %p239
    // Predicated region
    $region9: #{tpu_custom_call.1} parent=5 // pred_check
      _
    $region10: #{tpu_custom_call.1} parent=5 // pred_check_branch
      %242 = sbr.rel (%p239) target = $region12
    $region11: #{tpu_custom_call.1} parent=5 // pred_region
      %s243 = ssub.s32 %s15, 1
      // Predicated region
      $region13: #{tpu_custom_call.1} parent=11 // pred_check
        %p244 = pneg %p114
      $region14: #{tpu_custom_call.1} parent=11 // pred_check_branch
        %246 = sbr.rel (%p244) target = $region16
      $region15: #{tpu_custom_call.1} parent=11 // pred_region
        _
      $region16: #{tpu_custom_call.1} parent=11 // pred_fallthru
        _
      // Predicated region
      $region17: #{tpu_custom_call.1} parent=11 // pred_check
        %p247 = pneg %p135
      $region18: #{tpu_custom_call.1} parent=11 // pred_check_branch
        %249 = sbr.rel (%p247) target = $region20
      $region19: #{tpu_custom_call.1} parent=11 // pred_region
        _
      $region20: #{tpu_custom_call.1} parent=11 // pred_fallthru
        _
      // Predicated region
      $region21: #{tpu_custom_call.1} parent=11 // pred_check
        %p250 = pneg %p156
      $region22: #{tpu_custom_call.1} parent=11 // pred_check_branch
        %252 = sbr.rel (%p250) target = $region24
      $region23: #{tpu_custom_call.1} parent=11 // pred_region
        _
      $region24: #{tpu_custom_call.1} parent=11 // pred_fallthru
        _
      // Predicated region
      $region25: #{tpu_custom_call.1} parent=11 // pred_check
        %p253 = pneg %p177
      $region26: #{tpu_custom_call.1} parent=11 // pred_check_branch
        %255 = sbr.rel (%p253) target = $region28
      $region27: #{tpu_custom_call.1} parent=11 // pred_region
        _
      $region28: #{tpu_custom_call.1} parent=11 // pred_fallthru
        _
    $region12: #{tpu_custom_call.1} parent=5 // pred_fallthru
      _
    %p256 = scmp.lt.s32.totalorder %s15, 2
    // Predicated region
    $region29: #{tpu_custom_call.1} parent=5 // pred_check
      %p257 = pneg %p256
    $region30: #{tpu_custom_call.1} parent=5 // pred_check_branch
      %259 = sbr.rel (%p257) target = $region32
    $region31: #{tpu_custom_call.1} parent=5 // pred_region
      // Predicated region
      $region33: #{tpu_custom_call.1} parent=31 // pred_check
        %p260 = pneg %p35
      $region34: #{tpu_custom_call.1} parent=31 // pred_check_branch
        %262 = sbr.rel (%p260) target = $region36
      $region35: #{tpu_custom_call.1} parent=31 // pred_region
        %s263 = smul.u32 4, %s15
        %p264 = scmp.lt.s32.totalorder %s263, 7
        %s265 = scalar_select %p264, %s263, 7
        %s266 = smul.addr %s265, 8
        %s267 = scalar_lea.vmem %s0, %s266
        %s268 = smul.u32 4, %s15
      $region36: #{tpu_custom_call.1} parent=31 // pred_fallthru
        _
      // Predicated region
      $region37: #{tpu_custom_call.1} parent=31 // pred_check
        %p269 = pneg %p61
      $region38: #{tpu_custom_call.1} parent=31 // pred_check_branch
        %271 = sbr.rel (%p269) target = $region40
      $region39: #{tpu_custom_call.1} parent=31 // pred_region
        %s272 = smul.u32 4, %s15
        %p273 = scmp.lt.s32.totalorder %s272, 7
        %s274 = scalar_select %p273, %s272, 7
        %s275 = smul.addr %s274, 8
        %s276 = scalar_lea.vmem %s1, %s275
        %s277 = smul.u32 4, %s15
      $region40: #{tpu_custom_call.1} parent=31 // pred_fallthru
        _
      // Predicated region
      $region41: #{tpu_custom_call.1} parent=31 // pred_check
        %p278 = pneg %p87
      $region42: #{tpu_custom_call.1} parent=31 // pred_check_branch
        %280 = sbr.rel (%p278) target = $region44
      $region43: #{tpu_custom_call.1} parent=31 // pred_region
        %s281 = smul.u32 4, %s15
        %p282 = scmp.lt.s32.totalorder %s281, 7
        %s283 = scalar_select %p282, %s281, 7
        %s284 = smul.addr %s283, 8
        %s285 = scalar_lea.vmem %s2, %s284
        %s286 = smul.u32 4, %s15
      $region44: #{tpu_custom_call.1} parent=31 // pred_fallthru
        _
    $region32: #{tpu_custom_call.1} parent=5 // pred_fallthru
      _
    %p287 = scmp.le.s32.totalorder 1, %s15
    %p288 = scmp.lt.s32.totalorder %s15, 3
    %p289 = pnand %p287, %p288
    %p290 = pneg %p289
    // Predicated region
    $region45: #{tpu_custom_call.1} parent=5 // pred_check
      _
    $region46: #{tpu_custom_call.1} parent=5 // pred_check_branch
      %292 = sbr.rel (%p289) target = $region48
    $region47: #{tpu_custom_call.1} parent=5 // pred_region
      %s293 = ssub.s32 %s15, 1
      %s294 = smul.u32 4, %s20
      %p295 = scmp.lt.s32.totalorder %s294, 7
      %s296 = scalar_select %p295, %s294, 7
      %s297 = smul.addr %s296, 8
      %s298 = scalar_lea.vmem %s0, %s297
      %p299 = pneg %p41
      %p300 = pneg %p38
      %s301 = smul.u32 4, %s20
      %p302 = scmp.lt.s32.totalorder %s301, 7
      %s303 = scalar_select %p302, %s301, 7
      %s304 = smul.addr %s303, 8
      %s305 = scalar_lea.vmem %s1, %s304
      %p306 = pneg %p67
      %p307 = pneg %p64
      %s308 = smul.u32 4, %s20
      %p309 = scmp.lt.s32.totalorder %s308, 7
      %s310 = scalar_select %p309, %s308, 7
      %s311 = smul.addr %s310, 8
      %s312 = scalar_lea.vmem %s2, %s311
      %p313 = pneg %p93
      %p314 = pneg %p90
      %p315 = pneg %p114
      %p316 = pneg %p111
      %p317 = pneg %p135
      %p318 = pneg %p132
      %p319 = pneg %p156
      %p320 = pneg %p153
      %p321 = pneg %p177
      %p322 = pneg %p174
      %p323 = pneg %p203
      %p324 = pneg %p200
      %s325 = smul.u32 4, %s20
      %p326 = scmp.lt.s32.totalorder %s325, 7
      %s327 = scalar_select %p326, %s325, 7
      %s328 = smul.addr %s327, 8
      %s329 = scalar_lea.vmem %s7, %s328
      %p330 = pneg %p229
      %p331 = pneg %p226
      %s332 = smul.u32 4, %s20
      %p333 = scmp.lt.s32.totalorder %s332, 7
      %s334 = scalar_select %p333, %s332, 7
      %s335 = smul.addr %s334, 8
      %s336 = scalar_lea.vmem %s8, %s335
      %s337 = smul.u32 4, %s20
      %p338 = scmp.lt.s32.totalorder %s337, 7
      %s339 = scalar_select %p338, %s337, 7
      %s340 = smul.addr %s339, 8
      %s341 = scalar_lea.vmem %s0, %s340
      %s342 = smul.u32 4, %s20
      %s343 = smul.u32 4, %s20
      %p344 = scmp.lt.s32.totalorder %s343, 7
      %s345 = scalar_select %p344, %s343, 7
      %s346 = smul.addr %s345, 8
      %s347 = scalar_lea.vmem %s1, %s346
      %s348 = smul.u32 4, %s20
      %s349 = smul.u32 4, %s20
      %p350 = scmp.lt.s32.totalorder %s349, 7
      %s351 = scalar_select %p350, %s349, 7
      %s352 = smul.addr %s351, 8
      %s353 = scalar_lea.vmem %s2, %s352
      %s354 = smul.u32 4, %s20
      %s355 = smul.u32 4, %s20
      %p356 = scmp.lt.s32.totalorder %s355, 7
      %s357 = scalar_select %p356, %s355, 7
      %s358 = smul.addr %s357, 8
      %s359 = scalar_lea.vmem %s7, %s358
      %s360 = smul.u32 4, %s20
      %s361 = smul.u32 4, %s20
      %p362 = scmp.lt.s32.totalorder %s361, 7
      %s363 = scalar_select %p362, %s361, 7
      %s364 = smul.addr %s363, 8
      %s365 = scalar_lea.vmem %s8, %s364
      %s366 = smul.u32 4, %s20
      %v367 = vld [vmem:[%s341] sm:$0xff]
      %v368 = vld [vmem:[%s341 + $0x8] sm:$0xff]
      %v369 = vld [vmem:[%s341 + $0x10] sm:$0xff]
      %v370 = vld [vmem:[%s341 + $0x18] sm:$0xff]
      %v371 = vld [vmem:[%s347] sm:$0xff]
      %v372 = vld [vmem:[%s347 + $0x8] sm:$0xff]
      %v373 = vld [vmem:[%s347 + $0x10] sm:$0xff]
      %v374 = vld [vmem:[%s347 + $0x18] sm:$0xff]
      %v375 = vld [vmem:[%s353] sm:$0xff]
      %v376 = vld [vmem:[%s353 + $0x8] sm:$0xff]
      %v377 = vld [vmem:[%s353 + $0x10] sm:$0xff]
      %v378 = vld [vmem:[%s353 + $0x18] sm:$0xff]
      %v379 = vld [vmem:[%s3] sm:$0xff]
      %v380 = vld [vmem:[%s3 + $0x8] sm:$0xff]
      %v381 = vld [vmem:[%s3 + $0x10] sm:$0xff]
      %v382 = vld [vmem:[%s3 + $0x18] sm:$0xff]
      %v383 = vld [vmem:[%s4] sm:$0x1]
      %v385 = vperm.slane %v383, 0
      %vm387 = vcmask 261120
      %v389 = vsel %vm387, %v367, 0
      %v392 = vsel %vm387, %v368, 0
      %v395 = vsel %vm387, %v369, 0
      %v398 = vsel %vm387, %v370, 0
      %v401 = vsel %vm387, %v371, 0
      %v404 = vsel %vm387, %v372, 0
      %v407 = vsel %vm387, %v373, 0
      %v410 = vsel %vm387, %v374, 0
      %v413 = vsel %vm387, %v375, 0
      %v416 = vsel %vm387, %v376, 0
      %v419 = vsel %vm387, %v377, 0
      %v422 = vsel %vm387, %v378, 0
      %424 = vmatpush.msra.mxu0 0.0
      %425 = vmatpush.msra.mxu0 0.0
      %426 = vmatpush.msra.mxu0 0.0
      %427 = vmatpush.msra.mxu0 0.0
      %428 = vmatpush.msra.mxu0 0.0
      %429 = vmatpush.msra.mxu0 0.0
      %430 = vmatpush.msra.mxu0 0.0
      %431 = vmatpush.msra.mxu0 0.0
      %432 = vmatpush.msra.mxu0 0.0
      %433 = vmatpush.msra.mxu0 0.0
      %434 = vmatpush.msra.mxu0 0.0
      %435 = vmatpush.msra.mxu0 0.0
      %436 = vmatpush.msra.mxu0 %v382
      %437 = vmatpush.msra.mxu0 %v381
      %438 = vmatpush.msra.mxu0 %v380
      %439 = vmatpush.msra.mxu0 %v379
      %440 = vmatmul.f32.gmra.mxu0 %v389
      %v441 = vpop.f32.mrf.mxu0
      %v442 = vadd.f32 %v385, %v441
      %443 = vmatmul.f32.gmra.mxu0 %v392
      %v444 = vpop.f32.mrf.mxu0
      %v445 = vadd.f32 %v385, %v444
      %446 = vmatmul.f32.gmra.mxu0 %v395
      %v447 = vpop.f32.mrf.mxu0
      %v448 = vadd.f32 %v385, %v447
      %449 = vmatmul.f32.gmra.mxu0 %v398
      %v450 = vpop.f32.mrf.mxu0
      %v451 = vadd.f32 %v385, %v450
      %452 = vmatmul.f32.gmra.mxu0 %v401
      %v453 = vpop.f32.mrf.mxu0
      %v454 = vadd.f32 %v385, %v453
      %455 = vmatmul.f32.gmra.mxu0 %v404
      %v456 = vpop.f32.mrf.mxu0
      %v457 = vadd.f32 %v385, %v456
      %458 = vmatmul.f32.gmra.mxu0 %v407
      %v459 = vpop.f32.mrf.mxu0
      %v460 = vadd.f32 %v385, %v459
      %461 = vmatmul.f32.gmra.mxu0 %v410
      %v462 = vpop.f32.mrf.mxu0
      %v463 = vadd.f32 %v385, %v462
      %464 = vmatmul.f32.gmra.mxu0 %v413
      %v465 = vpop.f32.mrf.mxu0
      %v466 = vadd.f32 %v385, %v465
      %467 = vmatmul.f32.gmra.mxu0 %v416
      %v468 = vpop.f32.mrf.mxu0
      %v469 = vadd.f32 %v385, %v468
      %470 = vmatmul.f32.gmra.mxu0 %v419
      %v471 = vpop.f32.mrf.mxu0
      %v472 = vadd.f32 %v385, %v471
      %473 = vmatmul.f32.gmra.mxu0 %v422
      %v474 = vpop.f32.mrf.mxu0
      %v475 = vadd.f32 %v385, %v474
      %476 = vdwg.mxu0
      %v477 = vmul.f32 %v442, 0.5
      %v478 = vmul.f32 %v445, 0.5
      %v479 = vmul.f32 %v448, 0.5
      %v480 = vmul.f32 %v451, 0.5
      %v481 = vmul.f32 %v454, 0.5
      %v482 = vmul.f32 %v457, 0.5
      %v483 = vmul.f32 %v460, 0.5
      %v484 = vmul.f32 %v463, 0.5
      %v485 = vmul.f32 %v466, 0.5
      %v486 = vmul.f32 %v469, 0.5
      %v487 = vmul.f32 %v472, 0.5
      %v488 = vmul.f32 %v475, 0.5
      %v489 = vmul.f32 %v442, 0.70710677
      %v490 = vmul.f32 %v445, 0.70710677
      %v491 = vmul.f32 %v448, 0.70710677
      %v492 = vmul.f32 %v451, 0.70710677
      %v493 = vmul.f32 %v454, 0.70710677
      %v494 = vmul.f32 %v457, 0.70710677
      %v495 = vmul.f32 %v460, 0.70710677
      %v496 = vmul.f32 %v463, 0.70710677
      %v497 = vmul.f32 %v466, 0.70710677
      %v498 = vmul.f32 %v469, 0.70710677
      %v499 = vmul.f32 %v472, 0.70710677
      %v500 = vmul.f32 %v475, 0.70710677
      %v501 = vmul.f32 %v489, %v489
      %v502 = vmin.f32 16.0, %v501
      %v503 = vmul.f32 %v502, 2.1237322e-06
      %v504 = vadd.f32 %v503, 0.00028619796
      %v505 = vmul.f32 %v502, %v504
      %v506 = vadd.f32 %v505, 0.0036580483
      %v507 = vmul.f32 %v502, %v506
      %v508 = vadd.f32 %v507, 0.05243302
      %v509 = vmul.f32 %v502, %v508
      %v510 = vadd.f32 %v509, 0.18741608
      %v511 = vmul.f32 %v502, %v510
      %v512 = vadd.f32 %v511, 1.1283791
      %v513 = vmul.f32 %v489, %v512
      %v514 = vmul.f32 %v502, 3.8918573e-05
      %v515 = vadd.f32 %v514, 0.001143296
      %v516 = vmul.f32 %v502, %v515
      %v517 = vadd.f32 %v516, 0.014752088
      %v518 = vmul.f32 %v502, %v517
      %v519 = vadd.f32 %v518, 0.112945676
      %v520 = vmul.f32 %v502, %v519
      %v521 = vadd.f32 %v520, 0.4994258
      %v522 = vmul.f32 %v502, %v521
      %v523 = vadd.f32 %v522, 1.0
      %v524 = vrcp.pop %v523
      %v525 = vmul.f32 %v523, %v524
      %v526 = vsub.f32 1.0, %v525
      %v527 = vmul.f32 %v524, %v526
      %v528 = vadd.f32 %v524, %v527
      %vm529 = vweird.f32 %v523
      %vm530 = vweird.f32 %v524
      %vm531 = vmor %vm529, %vm530
      %v532 = vsel %vm531, %v524, %v528
      %v533 = vand.u32 2147483647, %v523
      %vm534 = vcmp.eq.f32.partialorder %v533, 8.507059e+37
      %v535 = vand.u32 %v523, 2147483648
      %v536 = vor.u32 1.1754944e-38, %v535
      %v537 = vsel %vm534, %v536, %v532
      %v538 = vmul.f32 %v513, %v537
      %v539 = vmin.f32 %v538, 1.0
      %v540 = vmax.f32 %v539, -1.0
      %v541 = vmul.f32 %v490, %v490
      %v542 = vmin.f32 16.0, %v541
      %v543 = vmul.f32 %v542, 2.1237322e-06
      %v544 = vadd.f32 %v543, 0.00028619796
      %v545 = vmul.f32 %v542, %v544
      %v546 = vadd.f32 %v545, 0.0036580483
      %v547 = vmul.f32 %v542, %v546
      %v548 = vadd.f32 %v547, 0.05243302
      %v549 = vmul.f32 %v542, %v548
      %v550 = vadd.f32 %v549, 0.18741608
      %v551 = vmul.f32 %v542, %v550
      %v552 = vadd.f32 %v551, 1.1283791
      %v553 = vmul.f32 %v490, %v552
      %v554 = vmul.f32 %v542, 3.8918573e-05
      %v555 = vadd.f32 %v554, 0.001143296
      %v556 = vmul.f32 %v542, %v555
      %v557 = vadd.f32 %v556, 0.014752088
      %v558 = vmul.f32 %v542, %v557
      %v559 = vadd.f32 %v558, 0.112945676
      %v560 = vmul.f32 %v542, %v559
      %v561 = vadd.f32 %v560, 0.4994258
      %v562 = vmul.f32 %v542, %v561
      %v563 = vadd.f32 %v562, 1.0
      %v564 = vrcp.pop %v563
      %v565 = vmul.f32 %v563, %v564
      %v566 = vsub.f32 1.0, %v565
      %v567 = vmul.f32 %v564, %v566
      %v568 = vadd.f32 %v564, %v567
      %vm569 = vweird.f32 %v563
      %vm570 = vweird.f32 %v564
      %vm571 = vmor %vm569, %vm570
      %v572 = vsel %vm571, %v564, %v568
      %v573 = vand.u32 2147483647, %v563
      %vm574 = vcmp.eq.f32.partialorder %v573, 8.507059e+37
      %v575 = vand.u32 %v563, 2147483648
      %v576 = vor.u32 1.1754944e-38, %v575
      %v577 = vsel %vm574, %v576, %v572
      %v578 = vmul.f32 %v553, %v577
      %v579 = vmin.f32 %v578, 1.0
      %v580 = vmax.f32 %v579, -1.0
      %v581 = vmul.f32 %v491, %v491
      %v582 = vmin.f32 16.0, %v581
      %v583 = vmul.f32 %v582, 2.1237322e-06
      %v584 = vadd.f32 %v583, 0.00028619796
      %v585 = vmul.f32 %v582, %v584
      %v586 = vadd.f32 %v585, 0.0036580483
      %v587 = vmul.f32 %v582, %v586
      %v588 = vadd.f32 %v587, 0.05243302
      %v589 = vmul.f32 %v582, %v588
      %v590 = vadd.f32 %v589, 0.18741608
      %v591 = vmul.f32 %v582, %v590
      %v592 = vadd.f32 %v591, 1.1283791
      %v593 = vmul.f32 %v491, %v592
      %v594 = vmul.f32 %v582, 3.8918573e-05
      %v595 = vadd.f32 %v594, 0.001143296
      %v596 = vmul.f32 %v582, %v595
      %v597 = vadd.f32 %v596, 0.014752088
      %v598 = vmul.f32 %v582, %v597
      %v599 = vadd.f32 %v598, 0.112945676
      %v600 = vmul.f32 %v582, %v599
      %v601 = vadd.f32 %v600, 0.4994258
      %v602 = vmul.f32 %v582, %v601
      %v603 = vadd.f32 %v602, 1.0
      %v604 = vrcp.pop %v603
      %v605 = vmul.f32 %v603, %v604
      %v606 = vsub.f32 1.0, %v605
      %v607 = vmul.f32 %v604, %v606
      %v608 = vadd.f32 %v604, %v607
      %vm609 = vweird.f32 %v603
      %vm610 = vweird.f32 %v604
      %vm611 = vmor %vm609, %vm610
      %v612 = vsel %vm611, %v604, %v608
      %v613 = vand.u32 2147483647, %v603
      %vm614 = vcmp.eq.f32.partialorder %v613, 8.507059e+37
      %v615 = vand.u32 %v603, 2147483648
      %v616 = vor.u32 1.1754944e-38, %v615
      %v617 = vsel %vm614, %v616, %v612
      %v618 = vmul.f32 %v593, %v617
      %v619 = vmin.f32 %v618, 1.0
      %v620 = vmax.f32 %v619, -1.0
      %v621 = vmul.f32 %v492, %v492
      %v622 = vmin.f32 16.0, %v621
      %v623 = vmul.f32 %v622, 2.1237322e-06
      %v624 = vadd.f32 %v623, 0.00028619796
      %v625 = vmul.f32 %v622, %v624
      %v626 = vadd.f32 %v625, 0.0036580483
      %v627 = vmul.f32 %v622, %v626
      %v628 = vadd.f32 %v627, 0.05243302
      %v629 = vmul.f32 %v622, %v628
      %v630 = vadd.f32 %v629, 0.18741608
      %v631 = vmul.f32 %v622, %v630
      %v632 = vadd.f32 %v631, 1.1283791
      %v633 = vmul.f32 %v492, %v632
      %v634 = vmul.f32 %v622, 3.8918573e-05
      %v635 = vadd.f32 %v634, 0.001143296
      %v636 = vmul.f32 %v622, %v635
      %v637 = vadd.f32 %v636, 0.014752088
      %v638 = vmul.f32 %v622, %v637
      %v639 = vadd.f32 %v638, 0.112945676
      %v640 = vmul.f32 %v622, %v639
      %v641 = vadd.f32 %v640, 0.4994258
      %v642 = vmul.f32 %v622, %v641
      %v643 = vadd.f32 %v642, 1.0
      %v644 = vrcp.pop %v643
      %v645 = vmul.f32 %v643, %v644
      %v646 = vsub.f32 1.0, %v645
      %v647 = vmul.f32 %v644, %v646
      %v648 = vadd.f32 %v644, %v647
      %vm649 = vweird.f32 %v643
      %vm650 = vweird.f32 %v644
      %vm651 = vmor %vm649, %vm650
      %v652 = vsel %vm651, %v644, %v648
      %v653 = vand.u32 2147483647, %v643
      %vm654 = vcmp.eq.f32.partialorder %v653, 8.507059e+37
      %v655 = vand.u32 %v643, 2147483648
      %v656 = vor.u32 1.1754944e-38, %v655
      %v657 = vsel %vm654, %v656, %v652
      %v658 = vmul.f32 %v633, %v657
      %v659 = vmin.f32 %v658, 1.0
      %v660 = vmax.f32 %v659, -1.0
      %v661 = vmul.f32 %v493, %v493
      %v662 = vmin.f32 16.0, %v661
      %v663 = vmul.f32 %v662, 2.1237322e-06
      %v664 = vadd.f32 %v663, 0.00028619796
      %v665 = vmul.f32 %v662, %v664
      %v666 = vadd.f32 %v665, 0.0036580483
      %v667 = vmul.f32 %v662, %v666
      %v668 = vadd.f32 %v667, 0.05243302
      %v669 = vmul.f32 %v662, %v668
      %v670 = vadd.f32 %v669, 0.18741608
      %v671 = vmul.f32 %v662, %v670
      %v672 = vadd.f32 %v671, 1.1283791
      %v673 = vmul.f32 %v493, %v672
      %v674 = vmul.f32 %v662, 3.8918573e-05
      %v675 = vadd.f32 %v674, 0.001143296
      %v676 = vmul.f32 %v662, %v675
      %v677 = vadd.f32 %v676, 0.014752088
      %v678 = vmul.f32 %v662, %v677
      %v679 = vadd.f32 %v678, 0.112945676
      %v680 = vmul.f32 %v662, %v679
      %v681 = vadd.f32 %v680, 0.4994258
      %v682 = vmul.f32 %v662, %v681
      %v683 = vadd.f32 %v682, 1.0
      %v684 = vrcp.pop %v683
      %v685 = vmul.f32 %v683, %v684
      %v686 = vsub.f32 1.0, %v685
      %v687 = vmul.f32 %v684, %v686
      %v688 = vadd.f32 %v684, %v687
      %vm689 = vweird.f32 %v683
      %vm690 = vweird.f32 %v684
      %vm691 = vmor %vm689, %vm690
      %v692 = vsel %vm691, %v684, %v688
      %v693 = vand.u32 2147483647, %v683
      %vm694 = vcmp.eq.f32.partialorder %v693, 8.507059e+37
      %v695 = vand.u32 %v683, 2147483648
      %v696 = vor.u32 1.1754944e-38, %v695
      %v697 = vsel %vm694, %v696, %v692
      %v698 = vmul.f32 %v673, %v697
      %v699 = vmin.f32 %v698, 1.0
      %v700 = vmax.f32 %v699, -1.0
      %v701 = vmul.f32 %v494, %v494
      %v702 = vmin.f32 16.0, %v701
      %v703 = vmul.f32 %v702, 2.1237322e-06
      %v704 = vadd.f32 %v703, 0.00028619796
      %v705 = vmul.f32 %v702, %v704
      %v706 = vadd.f32 %v705, 0.0036580483
      %v707 = vmul.f32 %v702, %v706
      %v708 = vadd.f32 %v707, 0.05243302
      %v709 = vmul.f32 %v702, %v708
      %v710 = vadd.f32 %v709, 0.18741608
      %v711 = vmul.f32 %v702, %v710
      %v712 = vadd.f32 %v711, 1.1283791
      %v713 = vmul.f32 %v494, %v712
      %v714 = vmul.f32 %v702, 3.8918573e-05
      %v715 = vadd.f32 %v714, 0.001143296
      %v716 = vmul.f32 %v702, %v715
      %v717 = vadd.f32 %v716, 0.014752088
      %v718 = vmul.f32 %v702, %v717
      %v719 = vadd.f32 %v718, 0.112945676
      %v720 = vmul.f32 %v702, %v719
      %v721 = vadd.f32 %v720, 0.4994258
      %v722 = vmul.f32 %v702, %v721
      %v723 = vadd.f32 %v722, 1.0
      %v724 = vrcp.pop %v723
      %v725 = vmul.f32 %v723, %v724
      %v726 = vsub.f32 1.0, %v725
      %v727 = vmul.f32 %v724, %v726
      %v728 = vadd.f32 %v724, %v727
      %vm729 = vweird.f32 %v723
      %vm730 = vweird.f32 %v724
      %vm731 = vmor %vm729, %vm730
      %v732 = vsel %vm731, %v724, %v728
      %v733 = vand.u32 2147483647, %v723
      %vm734 = vcmp.eq.f32.partialorder %v733, 8.507059e+37
      %v735 = vand.u32 %v723, 2147483648
      %v736 = vor.u32 1.1754944e-38, %v735
      %v737 = vsel %vm734, %v736, %v732
      %v738 = vmul.f32 %v713, %v737
      %v739 = vmin.f32 %v738, 1.0
      %v740 = vmax.f32 %v739, -1.0
      %v741 = vmul.f32 %v495, %v495
      %v742 = vmin.f32 16.0, %v741
      %v743 = vmul.f32 %v742, 2.1237322e-06
      %v744 = vadd.f32 %v743, 0.00028619796
      %v745 = vmul.f32 %v742, %v744
      %v746 = vadd.f32 %v745, 0.0036580483
      %v747 = vmul.f32 %v742, %v746
      %v748 = vadd.f32 %v747, 0.05243302
      %v749 = vmul.f32 %v742, %v748
      %v750 = vadd.f32 %v749, 0.18741608
      %v751 = vmul.f32 %v742, %v750
      %v752 = vadd.f32 %v751, 1.1283791
      %v753 = vmul.f32 %v495, %v752
      %v754 = vmul.f32 %v742, 3.8918573e-05
      %v755 = vadd.f32 %v754, 0.001143296
      %v756 = vmul.f32 %v742, %v755
      %v757 = vadd.f32 %v756, 0.014752088
      %v758 = vmul.f32 %v742, %v757
      %v759 = vadd.f32 %v758, 0.112945676
      %v760 = vmul.f32 %v742, %v759
      %v761 = vadd.f32 %v760, 0.4994258
      %v762 = vmul.f32 %v742, %v761
      %v763 = vadd.f32 %v762, 1.0
      %v764 = vrcp.pop %v763
      %v765 = vmul.f32 %v763, %v764
      %v766 = vsub.f32 1.0, %v765
      %v767 = vmul.f32 %v764, %v766
      %v768 = vadd.f32 %v764, %v767
      %vm769 = vweird.f32 %v763
      %vm770 = vweird.f32 %v764
      %vm771 = vmor %vm769, %vm770
      %v772 = vsel %vm771, %v764, %v768
      %v773 = vand.u32 2147483647, %v763
      %vm774 = vcmp.eq.f32.partialorder %v773, 8.507059e+37
      %v775 = vand.u32 %v763, 2147483648
      %v776 = vor.u32 1.1754944e-38, %v775
      %v777 = vsel %vm774, %v776, %v772
      %v778 = vmul.f32 %v753, %v777
      %v779 = vmin.f32 %v778, 1.0
      %v780 = vmax.f32 %v779, -1.0
      %v781 = vmul.f32 %v496, %v496
      %v782 = vmin.f32 16.0, %v781
      %v783 = vmul.f32 %v782, 2.1237322e-06
      %v784 = vadd.f32 %v783, 0.00028619796
      %v785 = vmul.f32 %v782, %v784
      %v786 = vadd.f32 %v785, 0.0036580483
      %v787 = vmul.f32 %v782, %v786
      %v788 = vadd.f32 %v787, 0.05243302
      %v789 = vmul.f32 %v782, %v788
      %v790 = vadd.f32 %v789, 0.18741608
      %v791 = vmul.f32 %v782, %v790
      %v792 = vadd.f32 %v791, 1.1283791
      %v793 = vmul.f32 %v496, %v792
      %v794 = vmul.f32 %v782, 3.8918573e-05
      %v795 = vadd.f32 %v794, 0.001143296
      %v796 = vmul.f32 %v782, %v795
      %v797 = vadd.f32 %v796, 0.014752088
      %v798 = vmul.f32 %v782, %v797
      %v799 = vadd.f32 %v798, 0.112945676
      %v800 = vmul.f32 %v782, %v799
      %v801 = vadd.f32 %v800, 0.4994258
      %v802 = vmul.f32 %v782, %v801
      %v803 = vadd.f32 %v802, 1.0
      %v804 = vrcp.pop %v803
      %v805 = vmul.f32 %v803, %v804
      %v806 = vsub.f32 1.0, %v805
      %v807 = vmul.f32 %v804, %v806
      %v808 = vadd.f32 %v804, %v807
      %vm809 = vweird.f32 %v803
      %vm810 = vweird.f32 %v804
      %vm811 = vmor %vm809, %vm810
      %v812 = vsel %vm811, %v804, %v808
      %v813 = vand.u32 2147483647, %v803
      %vm814 = vcmp.eq.f32.partialorder %v813, 8.507059e+37
      %v815 = vand.u32 %v803, 2147483648
      %v816 = vor.u32 1.1754944e-38, %v815
      %v817 = vsel %vm814, %v816, %v812
      %v818 = vmul.f32 %v793, %v817
      %v819 = vmin.f32 %v818, 1.0
      %v820 = vmax.f32 %v819, -1.0
      %v821 = vmul.f32 %v497, %v497
      %v822 = vmin.f32 16.0, %v821
      %v823 = vmul.f32 %v822, 2.1237322e-06
      %v824 = vadd.f32 %v823, 0.00028619796
      %v825 = vmul.f32 %v822, %v824
      %v826 = vadd.f32 %v825, 0.0036580483
      %v827 = vmul.f32 %v822, %v826
      %v828 = vadd.f32 %v827, 0.05243302
      %v829 = vmul.f32 %v822, %v828
      %v830 = vadd.f32 %v829, 0.18741608
      %v831 = vmul.f32 %v822, %v830
      %v832 = vadd.f32 %v831, 1.1283791
      %v833 = vmul.f32 %v497, %v832
      %v834 = vmul.f32 %v822, 3.8918573e-05
      %v835 = vadd.f32 %v834, 0.001143296
      %v836 = vmul.f32 %v822, %v835
      %v837 = vadd.f32 %v836, 0.014752088
      %v838 = vmul.f32 %v822, %v837
      %v839 = vadd.f32 %v838, 0.112945676
      %v840 = vmul.f32 %v822, %v839
      %v841 = vadd.f32 %v840, 0.4994258
      %v842 = vmul.f32 %v822, %v841
      %v843 = vadd.f32 %v842, 1.0
      %v844 = vrcp.pop %v843
      %v845 = vmul.f32 %v843, %v844
      %v846 = vsub.f32 1.0, %v845
      %v847 = vmul.f32 %v844, %v846
      %v848 = vadd.f32 %v844, %v847
      %vm849 = vweird.f32 %v843
      %vm850 = vweird.f32 %v844
      %vm851 = vmor %vm849, %vm850
      %v852 = vsel %vm851, %v844, %v848
      %v853 = vand.u32 2147483647, %v843
      %vm854 = vcmp.eq.f32.partialorder %v853, 8.507059e+37
      %v855 = vand.u32 %v843, 2147483648
      %v856 = vor.u32 1.1754944e-38, %v855
      %v857 = vsel %vm854, %v856, %v852
      %v858 = vmul.f32 %v833, %v857
      %v859 = vmin.f32 %v858, 1.0
      %v860 = vmax.f32 %v859, -1.0
      %v861 = vmul.f32 %v498, %v498
      %v862 = vmin.f32 16.0, %v861
      %v863 = vmul.f32 %v862, 2.1237322e-06
      %v864 = vadd.f32 %v863, 0.00028619796
      %v865 = vmul.f32 %v862, %v864
      %v866 = vadd.f32 %v865, 0.0036580483
      %v867 = vmul.f32 %v862, %v866
      %v868 = vadd.f32 %v867, 0.05243302
      %v869 = vmul.f32 %v862, %v868
      %v870 = vadd.f32 %v869, 0.18741608
      %v871 = vmul.f32 %v862, %v870
      %v872 = vadd.f32 %v871, 1.1283791
      %v873 = vmul.f32 %v498, %v872
      %v874 = vmul.f32 %v862, 3.8918573e-05
      %v875 = vadd.f32 %v874, 0.001143296
      %v876 = vmul.f32 %v862, %v875
      %v877 = vadd.f32 %v876, 0.014752088
      %v878 = vmul.f32 %v862, %v877
      %v879 = vadd.f32 %v878, 0.112945676
      %v880 = vmul.f32 %v862, %v879
      %v881 = vadd.f32 %v880, 0.4994258
      %v882 = vmul.f32 %v862, %v881
      %v883 = vadd.f32 %v882, 1.0
      %v884 = vrcp.pop %v883
      %v885 = vmul.f32 %v883, %v884
      %v886 = vsub.f32 1.0, %v885
      %v887 = vmul.f32 %v884, %v886
      %v888 = vadd.f32 %v884, %v887
      %vm889 = vweird.f32 %v883
      %vm890 = vweird.f32 %v884
      %vm891 = vmor %vm889, %vm890
      %v892 = vsel %vm891, %v884, %v888
      %v893 = vand.u32 2147483647, %v883
      %vm894 = vcmp.eq.f32.partialorder %v893, 8.507059e+37
      %v895 = vand.u32 %v883, 2147483648
      %v896 = vor.u32 1.1754944e-38, %v895
      %v897 = vsel %vm894, %v896, %v892
      %v898 = vmul.f32 %v873, %v897
      %v899 = vmin.f32 %v898, 1.0
      %v900 = vmax.f32 %v899, -1.0
      %v901 = vmul.f32 %v499, %v499
      %v902 = vmin.f32 16.0, %v901
      %v903 = vmul.f32 %v902, 2.1237322e-06
      %v904 = vadd.f32 %v903, 0.00028619796
      %v905 = vmul.f32 %v902, %v904
      %v906 = vadd.f32 %v905, 0.0036580483
      %v907 = vmul.f32 %v902, %v906
      %v908 = vadd.f32 %v907, 0.05243302
      %v909 = vmul.f32 %v902, %v908
      %v910 = vadd.f32 %v909, 0.18741608
      %v911 = vmul.f32 %v902, %v910
      %v912 = vadd.f32 %v911, 1.1283791
      %v913 = vmul.f32 %v499, %v912
      %v914 = vmul.f32 %v902, 3.8918573e-05
      %v915 = vadd.f32 %v914, 0.001143296
      %v916 = vmul.f32 %v902, %v915
      %v917 = vadd.f32 %v916, 0.014752088
      %v918 = vmul.f32 %v902, %v917
      %v919 = vadd.f32 %v918, 0.112945676
      %v920 = vmul.f32 %v902, %v919
      %v921 = vadd.f32 %v920, 0.4994258
      %v922 = vmul.f32 %v902, %v921
      %v923 = vadd.f32 %v922, 1.0
      %v924 = vrcp.pop %v923
      %v925 = vmul.f32 %v923, %v924
      %v926 = vsub.f32 1.0, %v925
      %v927 = vmul.f32 %v924, %v926
      %v928 = vadd.f32 %v924, %v927
      %vm929 = vweird.f32 %v923
      %vm930 = vweird.f32 %v924
      %vm931 = vmor %vm929, %vm930
      %v932 = vsel %vm931, %v924, %v928
      %v933 = vand.u32 2147483647, %v923
      %vm934 = vcmp.eq.f32.partialorder %v933, 8.507059e+37
      %v935 = vand.u32 %v923, 2147483648
      %v936 = vor.u32 1.1754944e-38, %v935
      %v937 = vsel %vm934, %v936, %v932
      %v938 = vmul.f32 %v913, %v937
      %v939 = vmin.f32 %v938, 1.0
      %v940 = vmax.f32 %v939, -1.0
      %v941 = vmul.f32 %v500, %v500
      %v942 = vmin.f32 16.0, %v941
      %v943 = vmul.f32 %v942, 2.1237322e-06
      %v944 = vadd.f32 %v943, 0.00028619796
      %v945 = vmul.f32 %v942, %v944
      %v946 = vadd.f32 %v945, 0.0036580483
      %v947 = vmul.f32 %v942, %v946
      %v948 = vadd.f32 %v947, 0.05243302
      %v949 = vmul.f32 %v942, %v948
      %v950 = vadd.f32 %v949, 0.18741608
      %v951 = vmul.f32 %v942, %v950
      %v952 = vadd.f32 %v951, 1.1283791
      %v953 = vmul.f32 %v500, %v952
      %v954 = vmul.f32 %v942, 3.8918573e-05
      %v955 = vadd.f32 %v954, 0.001143296
      %v956 = vmul.f32 %v942, %v955
      %v957 = vadd.f32 %v956, 0.014752088
      %v958 = vmul.f32 %v942, %v957
      %v959 = vadd.f32 %v958, 0.112945676
      %v960 = vmul.f32 %v942, %v959
      %v961 = vadd.f32 %v960, 0.4994258
      %v962 = vmul.f32 %v942, %v961
      %v963 = vadd.f32 %v962, 1.0
      %v964 = vrcp.pop %v963
      %v965 = vmul.f32 %v963, %v964
      %v966 = vsub.f32 1.0, %v965
      %v967 = vmul.f32 %v964, %v966
      %v968 = vadd.f32 %v964, %v967
      %vm969 = vweird.f32 %v963
      %vm970 = vweird.f32 %v964
      %vm971 = vmor %vm969, %vm970
      %v972 = vsel %vm971, %v964, %v968
      %v973 = vand.u32 2147483647, %v963
      %vm974 = vcmp.eq.f32.partialorder %v973, 8.507059e+37
      %v975 = vand.u32 %v963, 2147483648
      %v976 = vor.u32 1.1754944e-38, %v975
      %v977 = vsel %vm974, %v976, %v972
      %v978 = vmul.f32 %v953, %v977
      %v979 = vmin.f32 %v978, 1.0
      %v980 = vmax.f32 %v979, -1.0
      %v981 = vadd.f32 %v540, 1.0
      %v982 = vadd.f32 %v580, 1.0
      %v983 = vadd.f32 %v620, 1.0
      %v984 = vadd.f32 %v660, 1.0
      %v985 = vadd.f32 %v700, 1.0
      %v986 = vadd.f32 %v740, 1.0
      %v987 = vadd.f32 %v780, 1.0
      %v988 = vadd.f32 %v820, 1.0
      %v989 = vadd.f32 %v860, 1.0
      %v990 = vadd.f32 %v900, 1.0
      %v991 = vadd.f32 %v940, 1.0
      %v992 = vadd.f32 %v980, 1.0
      %v993 = vmul.f32 %v477, %v981
      %v994 = vmul.f32 %v478, %v982
      %v995 = vmul.f32 %v479, %v983
      %v996 = vmul.f32 %v480, %v984
      %v997 = vmul.f32 %v481, %v985
      %v998 = vmul.f32 %v482, %v986
      %v999 = vmul.f32 %v483, %v987
      %v1000 = vmul.f32 %v484, %v988
      %v1001 = vmul.f32 %v485, %v989
      %v1002 = vmul.f32 %v486, %v990
      %v1003 = vmul.f32 %v487, %v991
      %v1004 = vmul.f32 %v488, %v992
      %1009 = vrot.lane.b32.xlu0 %v997, 123
      %v1010 = vpop.permute.xlu0 %1009
      %1011 = vrot.lane.b32.xlu0 %v998, 123
      %v1012 = vpop.permute.xlu0 %1011
      %1013 = vrot.lane.b32.xlu0 %v999, 123
      %v1014 = vpop.permute.xlu0 %1013
      %1015 = vrot.lane.b32.xlu0 %v1000, 123
      %v1016 = vpop.permute.xlu0 %1015
      %v1021 = vmul.f32 %v993, %v1010
      %v1022 = vmul.f32 %v994, %v1012
      %v1023 = vmul.f32 %v995, %v1014
      %v1024 = vmul.f32 %v996, %v1016
      %vm1025 = vcmask 39936
      %v1026 = vsel %vm1025, %v1021, 0.0
      %1027 = vadd.xlane.f32.xlu0 %v1026
      %v1028 = vpop.xlane.xlu0 %1027
      %v1029 = vsel %vm1025, %v1022, 0.0
      %1030 = vadd.xlane.f32.xlu0 %v1029
      %v1031 = vpop.xlane.xlu0 %1030
      %v1032 = vsel %vm1025, %v1023, 0.0
      %1033 = vadd.xlane.f32.xlu0 %v1032
      %v1034 = vpop.xlane.xlu0 %1033
      %v1035 = vsel %vm1025, %v1024, 0.0
      %1036 = vadd.xlane.f32.xlu0 %v1035
      %v1037 = vpop.xlane.xlu0 %1036
      %v1038 = vmul.f32 %v1028, 0.2
      %v1039 = vmul.f32 %v1031, 0.2
      %v1040 = vmul.f32 %v1034, 0.2
      %v1041 = vmul.f32 %v1037, 0.2
      %v1042 = vsub.f32 %v1038, %v1038
      %v1043 = vsub.f32 %v1039, %v1039
      %v1044 = vsub.f32 %v1040, %v1040
      %v1045 = vsub.f32 %v1041, %v1041
      %v1046 = vmul.f32 %v1042, 1.442695
      %v1047 = vpow.pop %v1046
      %v1048 = vmul.f32 %v1043, 1.442695
      %v1049 = vpow.pop %v1048
      %v1050 = vmul.f32 %v1044, 1.442695
      %v1051 = vpow.pop %v1050
      %v1052 = vmul.f32 %v1045, 1.442695
      %v1053 = vpow.pop %v1052
      %v1054 = vadd.f32 %v1047, 0.0
      %v1055 = vadd.f32 %v1049, 0.0
      %v1056 = vadd.f32 %v1051, 0.0
      %v1057 = vadd.f32 %v1053, 0.0
      %v1058 = vrcp.pop %v1054
      %v1059 = vrcp.pop %v1055
      %v1060 = vrcp.pop %v1056
      %v1061 = vrcp.pop %v1057
      %v1062 = vmul.f32 %v1047, %v1058
      %v1063 = vmul.f32 %v1049, %v1059
      %v1064 = vmul.f32 %v1051, %v1060
      %v1065 = vmul.f32 %v1053, %v1061
      %v1066 = vmul.f32 %v1062, %v1001
      %v1067 = vmul.f32 %v1063, %v1002
      %v1068 = vmul.f32 %v1064, %v1003
      %v1069 = vmul.f32 %v1065, %v1004
      %v1070 = vsub.f32 %v1062, %v1062
      %v1071 = vsub.f32 %v1063, %v1063
      %v1072 = vsub.f32 %v1064, %v1064
      %v1073 = vsub.f32 %v1065, %v1065
      %v1074 = vmul.f32 %v1070, 1.442695
      %v1075 = vpow.pop %v1074
      %v1076 = vmul.f32 %v1071, 1.442695
      %v1077 = vpow.pop %v1076
      %v1078 = vmul.f32 %v1072, 1.442695
      %v1079 = vpow.pop %v1078
      %v1080 = vmul.f32 %v1073, 1.442695
      %v1081 = vpow.pop %v1080
      %v1082 = vadd.f32 %v1075, 0.0
      %v1083 = vadd.f32 %v1077, 0.0
      %v1084 = vadd.f32 %v1079, 0.0
      %v1085 = vadd.f32 %v1081, 0.0
      %v1086 = vlog2.pop %v1082
      %v1087 = vmul.f32 %v1086, 0.6931472
      %v1088 = vlog2.pop %v1083
      %v1089 = vmul.f32 %v1088, 0.6931472
      %v1090 = vlog2.pop %v1084
      %v1091 = vmul.f32 %v1090, 0.6931472
      %v1092 = vlog2.pop %v1085
      %v1093 = vmul.f32 %v1092, 0.6931472
      %v1094 = vadd.f32 %v1062, %v1087
      %v1095 = vadd.f32 %v1063, %v1089
      %v1096 = vadd.f32 %v1064, %v1091
      %v1097 = vadd.f32 %v1065, %v1093
      %v1098 = vsel %vm1025, %v993, 0.0
      %1099 = vadd.xlane.f32.xlu0 %v1098
      %v1100 = vpop.xlane.xlu0 %1099
      %v1101 = vsel %vm1025, %v994, 0.0
      %1102 = vadd.xlane.f32.xlu0 %v1101
      %v1103 = vpop.xlane.xlu0 %1102
      %v1104 = vsel %vm1025, %v995, 0.0
      %1105 = vadd.xlane.f32.xlu0 %v1104
      %v1106 = vpop.xlane.xlu0 %1105
      %v1107 = vsel %vm1025, %v996, 0.0
      %1108 = vadd.xlane.f32.xlu0 %v1107
      %v1109 = vpop.xlane.xlu0 %1108
      %v1110 = vmul.f32 %v1100, 0.2
      %v1111 = vmul.f32 %v1103, 0.2
      %v1112 = vmul.f32 %v1106, 0.2
      %v1113 = vmul.f32 %v1109, 0.2
      %v1114 = vld [vmem:[%s5] sm:$0x1f]
      %v1115 = vld [vmem:[%s6] sm:$0x1]
      %v1117 = vperm.slane %v1115, 0
      %1123 = vrot.lane.b32.xlu0 %v1066, 118
      %v1124 = vpop.permute.xlu0 %1123
      %1125 = vrot.lane.b32.xlu0 %v1067, 118
      %v1126 = vpop.permute.xlu0 %1125
      %1127 = vrot.lane.b32.xlu0 %v1068, 118
      %v1128 = vpop.permute.xlu0 %1127
      %1129 = vrot.lane.b32.xlu0 %v1069, 118
      %v1130 = vpop.permute.xlu0 %1129
      %v1131 = vsel %vm1025, %v1124, 0
      %v1133 = vsel %vm1025, %v1126, 0
      %v1135 = vsel %vm1025, %v1128, 0
      %v1137 = vsel %vm1025, %v1130, 0
      %vm1139 = vcmask 1044480
      %v1141 = vsel %vm1139, %v1114, 0
      %1143 = vmatpush.msra.mxu0 0.0
      %1144 = vmatpush.msra.mxu0 0.0
      %1145 = vmatpush.msra.mxu0 0.0
      %1146 = vmatpush.msra.mxu0 0.0
      %1147 = vmatpush.msra.mxu0 0.0
      %1148 = vmatpush.msra.mxu0 0.0
      %1149 = vmatpush.msra.mxu0 0.0
      %1150 = vmatpush.msra.mxu0 0.0
      %1151 = vmatpush.msra.mxu0 0.0
      %1152 = vmatpush.msra.mxu0 0.0
      %1153 = vmatpush.msra.mxu0 0.0
      %1154 = vmatpush.msra.mxu0 0.0
      %1155 = vmatpush.msra.mxu0 0.0
      %1156 = vmatpush.msra.mxu0 0.0
      %1157 = vmatpush.msra.mxu0 0.0
      %1158 = vmatpush.msra.mxu0 %v1141
      %1159 = vmatmul.f32.gmra.mxu0 %v1131
      %v1160 = vpop.f32.mrf.mxu0
      %v1161 = vadd.f32 %v1117, %v1160
      %1162 = vmatmul.f32.gmra.mxu0 %v1133
      %v1163 = vpop.f32.mrf.mxu0
      %v1164 = vadd.f32 %v1117, %v1163
      %1165 = vmatmul.f32.gmra.mxu0 %v1135
      %v1166 = vpop.f32.mrf.mxu0
      %v1167 = vadd.f32 %v1117, %v1166
      %1168 = vmatmul.f32.gmra.mxu0 %v1137
      %v1169 = vpop.f32.mrf.mxu0
      %v1170 = vadd.f32 %v1117, %v1169
      %1171 = vdwg.mxu0
      %v1172 = vmul.f32 %v1161, 0.5
      %v1173 = vmul.f32 %v1164, 0.5
      %v1174 = vmul.f32 %v1167, 0.5
      %v1175 = vmul.f32 %v1170, 0.5
      %v1176 = vmul.f32 %v1161, 0.70710677
      %v1177 = vmul.f32 %v1164, 0.70710677
      %v1178 = vmul.f32 %v1167, 0.70710677
      %v1179 = vmul.f32 %v1170, 0.70710677
      %v1180 = vmul.f32 %v1176, %v1176
      %v1181 = vmin.f32 16.0, %v1180
      %v1182 = vmul.f32 %v1181, 2.1237322e-06
      %v1183 = vadd.f32 %v1182, 0.00028619796
      %v1184 = vmul.f32 %v1181, %v1183
      %v1185 = vadd.f32 %v1184, 0.0036580483
      %v1186 = vmul.f32 %v1181, %v1185
      %v1187 = vadd.f32 %v1186, 0.05243302
      %v1188 = vmul.f32 %v1181, %v1187
      %v1189 = vadd.f32 %v1188, 0.18741608
      %v1190 = vmul.f32 %v1181, %v1189
      %v1191 = vadd.f32 %v1190, 1.1283791
      %v1192 = vmul.f32 %v1176, %v1191
      %v1193 = vmul.f32 %v1181, 3.8918573e-05
      %v1194 = vadd.f32 %v1193, 0.001143296
      %v1195 = vmul.f32 %v1181, %v1194
      %v1196 = vadd.f32 %v1195, 0.014752088
      %v1197 = vmul.f32 %v1181, %v1196
      %v1198 = vadd.f32 %v1197, 0.112945676
      %v1199 = vmul.f32 %v1181, %v1198
      %v1200 = vadd.f32 %v1199, 0.4994258
      %v1201 = vmul.f32 %v1181, %v1200
      %v1202 = vadd.f32 %v1201, 1.0
      %v1203 = vrcp.pop %v1202
      %v1204 = vmul.f32 %v1202, %v1203
      %v1205 = vsub.f32 1.0, %v1204
      %v1206 = vmul.f32 %v1203, %v1205
      %v1207 = vadd.f32 %v1203, %v1206
      %vm1208 = vweird.f32 %v1202
      %vm1209 = vweird.f32 %v1203
      %vm1210 = vmor %vm1208, %vm1209
      %v1211 = vsel %vm1210, %v1203, %v1207
      %v1212 = vand.u32 2147483647, %v1202
      %vm1213 = vcmp.eq.f32.partialorder %v1212, 8.507059e+37
      %v1214 = vand.u32 %v1202, 2147483648
      %v1215 = vor.u32 1.1754944e-38, %v1214
      %v1216 = vsel %vm1213, %v1215, %v1211
      %v1217 = vmul.f32 %v1192, %v1216
      %v1218 = vmin.f32 %v1217, 1.0
      %v1219 = vmax.f32 %v1218, -1.0
      %v1220 = vmul.f32 %v1177, %v1177
      %v1221 = vmin.f32 16.0, %v1220
      %v1222 = vmul.f32 %v1221, 2.1237322e-06
      %v1223 = vadd.f32 %v1222, 0.00028619796
      %v1224 = vmul.f32 %v1221, %v1223
      %v1225 = vadd.f32 %v1224, 0.0036580483
      %v1226 = vmul.f32 %v1221, %v1225
      %v1227 = vadd.f32 %v1226, 0.05243302
      %v1228 = vmul.f32 %v1221, %v1227
      %v1229 = vadd.f32 %v1228, 0.18741608
      %v1230 = vmul.f32 %v1221, %v1229
      %v1231 = vadd.f32 %v1230, 1.1283791
      %v1232 = vmul.f32 %v1177, %v1231
      %v1233 = vmul.f32 %v1221, 3.8918573e-05
      %v1234 = vadd.f32 %v1233, 0.001143296
      %v1235 = vmul.f32 %v1221, %v1234
      %v1236 = vadd.f32 %v1235, 0.014752088
      %v1237 = vmul.f32 %v1221, %v1236
      %v1238 = vadd.f32 %v1237, 0.112945676
      %v1239 = vmul.f32 %v1221, %v1238
      %v1240 = vadd.f32 %v1239, 0.4994258
      %v1241 = vmul.f32 %v1221, %v1240
      %v1242 = vadd.f32 %v1241, 1.0
      %v1243 = vrcp.pop %v1242
      %v1244 = vmul.f32 %v1242, %v1243
      %v1245 = vsub.f32 1.0, %v1244
      %v1246 = vmul.f32 %v1243, %v1245
      %v1247 = vadd.f32 %v1243, %v1246
      %vm1248 = vweird.f32 %v1242
      %vm1249 = vweird.f32 %v1243
      %vm1250 = vmor %vm1248, %vm1249
      %v1251 = vsel %vm1250, %v1243, %v1247
      %v1252 = vand.u32 2147483647, %v1242
      %vm1253 = vcmp.eq.f32.partialorder %v1252, 8.507059e+37
      %v1254 = vand.u32 %v1242, 2147483648
      %v1255 = vor.u32 1.1754944e-38, %v1254
      %v1256 = vsel %vm1253, %v1255, %v1251
      %v1257 = vmul.f32 %v1232, %v1256
      %v1258 = vmin.f32 %v1257, 1.0
      %v1259 = vmax.f32 %v1258, -1.0
      %v1260 = vmul.f32 %v1178, %v1178
      %v1261 = vmin.f32 16.0, %v1260
      %v1262 = vmul.f32 %v1261, 2.1237322e-06
      %v1263 = vadd.f32 %v1262, 0.00028619796
      %v1264 = vmul.f32 %v1261, %v1263
      %v1265 = vadd.f32 %v1264, 0.0036580483
      %v1266 = vmul.f32 %v1261, %v1265
      %v1267 = vadd.f32 %v1266, 0.05243302
      %v1268 = vmul.f32 %v1261, %v1267
      %v1269 = vadd.f32 %v1268, 0.18741608
      %v1270 = vmul.f32 %v1261, %v1269
      %v1271 = vadd.f32 %v1270, 1.1283791
      %v1272 = vmul.f32 %v1178, %v1271
      %v1273 = vmul.f32 %v1261, 3.8918573e-05
      %v1274 = vadd.f32 %v1273, 0.001143296
      %v1275 = vmul.f32 %v1261, %v1274
      %v1276 = vadd.f32 %v1275, 0.014752088
      %v1277 = vmul.f32 %v1261, %v1276
      %v1278 = vadd.f32 %v1277, 0.112945676
      %v1279 = vmul.f32 %v1261, %v1278
      %v1280 = vadd.f32 %v1279, 0.4994258
      %v1281 = vmul.f32 %v1261, %v1280
      %v1282 = vadd.f32 %v1281, 1.0
      %v1283 = vrcp.pop %v1282
      %v1284 = vmul.f32 %v1282, %v1283
      %v1285 = vsub.f32 1.0, %v1284
      %v1286 = vmul.f32 %v1283, %v1285
      %v1287 = vadd.f32 %v1283, %v1286
      %vm1288 = vweird.f32 %v1282
      %vm1289 = vweird.f32 %v1283
      %vm1290 = vmor %vm1288, %vm1289
      %v1291 = vsel %vm1290, %v1283, %v1287
      %v1292 = vand.u32 2147483647, %v1282
      %vm1293 = vcmp.eq.f32.partialorder %v1292, 8.507059e+37
      %v1294 = vand.u32 %v1282, 2147483648
      %v1295 = vor.u32 1.1754944e-38, %v1294
      %v1296 = vsel %vm1293, %v1295, %v1291
      %v1297 = vmul.f32 %v1272, %v1296
      %v1298 = vmin.f32 %v1297, 1.0
      %v1299 = vmax.f32 %v1298, -1.0
      %v1300 = vmul.f32 %v1179, %v1179
      %v1301 = vmin.f32 16.0, %v1300
      %v1302 = vmul.f32 %v1301, 2.1237322e-06
      %v1303 = vadd.f32 %v1302, 0.00028619796
      %v1304 = vmul.f32 %v1301, %v1303
      %v1305 = vadd.f32 %v1304, 0.0036580483
      %v1306 = vmul.f32 %v1301, %v1305
      %v1307 = vadd.f32 %v1306, 0.05243302
      %v1308 = vmul.f32 %v1301, %v1307
      %v1309 = vadd.f32 %v1308, 0.18741608
      %v1310 = vmul.f32 %v1301, %v1309
      %v1311 = vadd.f32 %v1310, 1.1283791
      %v1312 = vmul.f32 %v1179, %v1311
      %v1313 = vmul.f32 %v1301, 3.8918573e-05
      %v1314 = vadd.f32 %v1313, 0.001143296
      %v1315 = vmul.f32 %v1301, %v1314
      %v1316 = vadd.f32 %v1315, 0.014752088
      %v1317 = vmul.f32 %v1301, %v1316
      %v1318 = vadd.f32 %v1317, 0.112945676
      %v1319 = vmul.f32 %v1301, %v1318
      %v1320 = vadd.f32 %v1319, 0.4994258
      %v1321 = vmul.f32 %v1301, %v1320
      %v1322 = vadd.f32 %v1321, 1.0
      %v1323 = vrcp.pop %v1322
      %v1324 = vmul.f32 %v1322, %v1323
      %v1325 = vsub.f32 1.0, %v1324
      %v1326 = vmul.f32 %v1323, %v1325
      %v1327 = vadd.f32 %v1323, %v1326
      %vm1328 = vweird.f32 %v1322
      %vm1329 = vweird.f32 %v1323
      %vm1330 = vmor %vm1328, %vm1329
      %v1331 = vsel %vm1330, %v1323, %v1327
      %v1332 = vand.u32 2147483647, %v1322
      %vm1333 = vcmp.eq.f32.partialorder %v1332, 8.507059e+37
      %v1334 = vand.u32 %v1322, 2147483648
      %v1335 = vor.u32 1.1754944e-38, %v1334
      %v1336 = vsel %vm1333, %v1335, %v1331
      %v1337 = vmul.f32 %v1312, %v1336
      %v1338 = vmin.f32 %v1337, 1.0
      %v1339 = vmax.f32 %v1338, -1.0
      %v1340 = vadd.f32 %v1219, 1.0
      %v1341 = vadd.f32 %v1259, 1.0
      %v1342 = vadd.f32 %v1299, 1.0
      %v1343 = vadd.f32 %v1339, 1.0
      %v1344 = vmul.f32 %v1172, %v1340
      %v1345 = vmul.f32 %v1173, %v1341
      %v1346 = vmul.f32 %v1174, %v1342
      %v1347 = vmul.f32 %v1175, %v1343
      %1348 = vst.msk [vmem:[%s359] sm:$0xff] %vm387, %v1344
      %1349 = vst.msk [vmem:[%s359 + $0x8] sm:$0xff] %vm387, %v1345
      %1350 = vst.msk [vmem:[%s359 + $0x10] sm:$0xff] %vm387, %v1346
      %1351 = vst.msk [vmem:[%s359 + $0x18] sm:$0xff] %vm387, %v1347
      %vm1352 = vcmask 7168
      %v1353 = vsel %vm1352, %v1094, %v1110
      %v1354 = vsel %vm1352, %v1095, %v1111
      %v1355 = vsel %vm1352, %v1096, %v1112
      %v1356 = vsel %vm1352, %v1097, %v1113
      %vm1357 = vcmask 15360
      %1358 = vst.msk [vmem:[%s365] sm:$0xff] %vm1357, %v1353
      %1359 = vst.msk [vmem:[%s365 + $0x8] sm:$0xff] %vm1357, %v1354
      %1360 = vst.msk [vmem:[%s365 + $0x10] sm:$0xff] %vm1357, %v1355
      %1361 = vst.msk [vmem:[%s365 + $0x18] sm:$0xff] %vm1357, %v1356
      %s1362 = smul.u32 4, %s20
      %p1363 = scmp.lt.s32.totalorder %s1362, 7
      %s1364 = scalar_select %p1363, %s1362, 7
      %s1365 = smul.addr %s1364, 8
      %s1366 = scalar_lea.vmem %s7, %s1365
      %s1367 = smul.u32 4, %s20
      %p1368 = scmp.lt.s32.totalorder %s1367, 7
      %s1369 = scalar_select %p1368, %s1367, 7
      %s1370 = smul.addr %s1369, 8
      %s1371 = scalar_lea.vmem %s8, %s1370
      // Predicated region
      $region49: #{tpu_custom_call.1} parent=47 // pred_check
        %p1372 = pneg %p200
      $region50: #{tpu_custom_call.1} parent=47 // pred_check_branch
        %1374 = sbr.rel (%p1372) target = $region52
      $region51: #{tpu_custom_call.1} parent=47 // pred_region
        %s1375 = smul.u32 4, %s20
      $region52: #{tpu_custom_call.1} parent=47 // pred_fallthru
        _
      // Predicated region
      $region53: #{tpu_custom_call.1} parent=47 // pred_check
        %p1376 = pneg %p226
      $region54: #{tpu_custom_call.1} parent=47 // pred_check_branch
        %1378 = sbr.rel (%p1376) target = $region56
      $region55: #{tpu_custom_call.1} parent=47 // pred_region
        %s1379 = smul.u32 4, %s20
      $region56: #{tpu_custom_call.1} parent=47 // pred_fallthru
        _
    $region48: #{tpu_custom_call.1} parent=5 // pred_fallthru
      _
    %p1380 = scmp.le.s32.totalorder 2, %s15
    // Predicated region
    $region57: #{tpu_custom_call.1} parent=5 // pred_check
      %p1381 = pneg %p1380
    $region58: #{tpu_custom_call.1} parent=5 // pred_check_branch
      %1383 = sbr.rel (%p1381) target = $region60
    $region59: #{tpu_custom_call.1} parent=5 // pred_region
      %s1384 = ssub.s32 %s15, 2
      // Predicated region
      $region61: #{tpu_custom_call.1} parent=59 // pred_check
        %p1385 = pneg %p206
      $region62: #{tpu_custom_call.1} parent=59 // pred_check_branch
        %1387 = sbr.rel (%p1385) target = $region64
      $region63: #{tpu_custom_call.1} parent=59 // pred_region
        %s1388 = smul.u32 4, %s21
        %p1389 = scmp.lt.s32.totalorder %s1388, 7
        %s1390 = scalar_select %p1389, %s1388, 7
        %s1391 = smul.addr %s1390, 8
        %s1392 = scalar_lea.vmem %s7, %s1391
      $region64: #{tpu_custom_call.1} parent=59 // pred_fallthru
        _
      // Predicated region
      $region65: #{tpu_custom_call.1} parent=59 // pred_check
        %p1393 = pneg %p232
      $region66: #{tpu_custom_call.1} parent=59 // pred_check_branch
        %1395 = sbr.rel (%p1393) target = $region68
      $region67: #{tpu_custom_call.1} parent=59 // pred_region
        %s1396 = smul.u32 4, %s21
        %p1397 = scmp.lt.s32.totalorder %s1396, 7
        %s1398 = scalar_select %p1397, %s1396, 7
        %s1399 = smul.addr %s1398, 8
        %s1400 = scalar_lea.vmem %s8, %s1399
      $region68: #{tpu_custom_call.1} parent=59 // pred_fallthru
        _
    $region60: #{tpu_custom_call.1} parent=5 // pred_fallthru
      _
  $region6: #{tpu_custom_call.1} parent=0 // loop_footer
    %s19 = sadd.s32 1, %s15
  $region7: #{tpu_custom_call.1} parent=0 // loop_footer_branch
    %14 = sbr.rel target = $region3
  $region8: #{tpu_custom_call.1} parent=0 // loop_exit
    _

</llo_original>
